<compile_context>
chip_gen: v6e
topology: v6e:2x2x1
jax: 0.10.0
libtpu: 0.0.40
codegen_flags: <defaults>
</compile_context>

<pallas_src>
import jax
import jax.numpy as jnp
import numpy as np
from jax.experimental import pallas as pl
from jax.experimental.pallas import tpu as pltpu

# ----- small synthetic config (consistent with MemoryFusionNetwork defaults) -----
BATCH = 2
NUM_MEM = 8
MODEL_DIM = 32
MEM_DIM = 16
NUM_HEADS = 8                      # default num_attention_heads
NUM_LAYERS = 2                     # default fusion_layers
HEAD_DIM = MODEL_DIM // NUM_HEADS
HALF_DIM = MODEL_DIM // 2
LN_EPS = 1e-5
LANES = 128                        # packed-buffer / packed-output lane width
D4 = 4 * MODEL_DIM                 # k0|v0|k1|v1 fused lane width

# ----- W_pack row offsets (every block left-aligned into 128 lanes; offsets are x8) -----
OFF_W_MP = 0                                        # memory_projection        [MEM_DIM, D]
OFF_W_KV = OFF_W_MP + MEM_DIM                       # fused k/v (both layers)  [D, 4D]
OFF_AQW = OFF_W_KV + MODEL_DIM                      # per-layer ext q in-proj  [D, 4D]
OFF_SEGK = OFF_AQW + NUM_LAYERS * MODEL_DIM         # head-segment (k blocks)  [4D, H]
OFF_SEGTV = OFF_SEGK + D4                           # head-segment^T (v blocks)[H, 4D]
OFF_AOW = OFF_SEGTV + NUM_HEADS                     # per-layer ext out-proj   [4D, D]
OFF_W_OUT = OFF_AOW + NUM_LAYERS * D4               # output_projection        [D, D]
OFF_W_C1 = OFF_W_OUT + MODEL_DIM                    # confidence layer 1       [D, D/2]
OFF_W_C2 = OFF_W_C1 + MODEL_DIM                     # confidence layer 2       [D/2, 1]
W_ROWS = OFF_W_C2 + HALF_DIM                        # = 584 (multiple of 8)

# ----- V_pack row indices (each vector pre-replicated to V_REP sublanes host-side) -----
V_REP = BATCH * NUM_MEM            # 16: max row-count any bias is consumed at
VR_B_MP, VR_G_MP, VR_BE_MP, VR_B_KV = 0, 1, 2, 3
VR_AQB = 4                          # + layer   (extended, scaled, k-block lanes)
VR_AOB = VR_AQB + NUM_LAYERS        # + layer
VR_LNG = VR_AOB + NUM_LAYERS        # + layer
VR_LNB = VR_LNG + NUM_LAYERS        # + layer
VR_B_OUT = VR_LNB + NUM_LAYERS
VR_G_OUT = VR_B_OUT + 1
VR_BE_OUT = VR_G_OUT + 1
VR_B_C1 = VR_BE_OUT + 1
VR_B_C2 = VR_B_C1 + 1
V_ROWS = VR_B_C2 + 1                # = 17 distinct vectors
V_PACK_ROWS = V_ROWS * V_REP        # = 272


def _layer_norm(x, gamma, beta, eps=LN_EPS):
    # single-pass LN: E[x], E[x^2] are independent reductions (shorter XLU critical path).
    # NOTE: fine at these scales / tolerances; two-pass form is safer for arbitrary real inputs.
    mu = jnp.mean(x, axis=-1, keepdims=True)
    mu2 = jnp.mean(x * x, axis=-1, keepdims=True)
    var = mu2 - mu * mu
    return (x - mu) * jax.lax.rsqrt(var + eps) * gamma + beta


def fusion_kernel(q_ref, mem_ref, w_ref, v_ref, out_ref):
    B = q_ref.shape[0]
    BM = mem_ref.shape[0]
    D, Dm, M = MODEL_DIM, MEM_DIM, NUM_MEM
    H, L, Dh = NUM_HEADS, NUM_LAYERS, HALF_DIM

    def wblk(row, nrows, ncols):          # weight block (row offsets are multiples of 8)
        return w_ref[row:row + nrows, 0:ncols]

    def vblk(idx, nrows, ncols):          # bias/LN vector, pre-replicated host-side -> no bcast
        row = idx * V_REP
        return v_ref[row:row + nrows, 0:ncols]

    q = q_ref[...]                        # [B, D]
    mem2 = mem_ref[...]                   # [B*M, Dm]

    # ---- memory_projection: Linear(Dm->D) + LayerNorm + ReLU (Dropout = identity) ----
    pm = jnp.dot(mem2, wblk(OFF_W_MP, Dm, D),
                 preferred_element_type=jnp.float32) + vblk(VR_B_MP, BM, D)
    pm = jnp.maximum(_layer_norm(pm, vblk(VR_G_MP, BM, D), vblk(VR_BE_MP, BM, D)), 0.0)

    # ---- fused key/value projections for BOTH fusion layers: one [B*M,32]@[32,128] matmul ----
    # lane blocks: [ k(l=0) | v(l=0) | k(l=1) | v(l=1) ]
    kv = jnp.dot(pm, wblk(OFF_W_KV, D, D4),
                 preferred_element_type=jnp.float32) + vblk(VR_B_KV, BM, D4)
    kv3 = kv.reshape(B, M, D4)

    seg_k = wblk(OFF_SEGK, D4, H)         # [4D, H]: one-hot head map on both k lane-blocks
    seg_tv = wblk(OFF_SEGTV, H, D4)       # [H, 4D]: one-hot head map into both v lane-blocks

    fusion_state = q
    attn_acc = jnp.zeros((B, M), jnp.float32)

    for l in range(L):                    # static unroll (L = 2)
        # extended q in-projection: 1/sqrt(hd) folded in, placed in layer-l k lane-block.
        qh = jnp.dot(fusion_state, wblk(OFF_AQW + l * D, D, D4),
                     preferred_element_type=jnp.float32) + vblk(VR_AQB + l, B, D4)   # [B, 4D]

        # all-head scores: elementwise q*k on the full 128 lanes (zero outside layer-l k block),
        # then contract within each head via the seg matmul — no lane slicing anywhere.
        prod = qh[:, None, :] * kv3                                                  # [B, M, 4D]
        scores = jnp.dot(prod.reshape(BM, D4), seg_k,
                         preferred_element_type=jnp.float32).reshape(B, M, H)        # [B, M, H]

        # softmax over the memory axis, all heads at once (EUP reciprocal, not VPU divide)
        scores = scores - jnp.max(scores, axis=1, keepdims=True)
        e = jnp.exp(scores)
        p = e * pl.reciprocal(jnp.sum(e, axis=1, keepdims=True), approx=True)        # [B, M, H]

        # context: broadcast per-head weights into the v lane-blocks via seg^T, weight V,
        # reduce over memories; layer selection happens in the extended out-proj below.
        p_exp = jnp.dot(p.reshape(BM, H), seg_tv,
                        preferred_element_type=jnp.float32).reshape(B, M, D4)        # [B, M, 4D]
        ctx = jnp.sum(p_exp * kv3, axis=1)                                           # [B, 4D]

        # extended out-proj consumes the full 128-lane ctx row (zeros outside layer-l v block)
        attn_out = jnp.dot(ctx, wblk(OFF_AOW + l * D4, D4, D),
                           preferred_element_type=jnp.float32) + vblk(VR_AOB + l, B, D)

        # nn.MultiheadAttention returns head-averaged weights; MultiHeadMemoryAttention then
        # re-applies softmax over the memory axis.  Inputs are in [0,1] -> no max-subtraction.
        w_avg = jnp.sum(p, axis=2) * (1.0 / H)                                       # [B, M]
        we = jnp.exp(w_avg)
        attn_acc = attn_acc + we * pl.reciprocal(jnp.sum(we, axis=-1, keepdims=True),
                                                 approx=True)

        # residual + LayerNorm (dropout = identity)
        fusion_state = _layer_norm(fusion_state + attn_out,
                                   vblk(VR_LNG + l, B, D), vblk(VR_LNB + l, B, D))

    # ---- output_projection: Linear + LayerNorm (dropout = identity) ----
    fused = jnp.dot(fusion_state, wblk(OFF_W_OUT, D, D),
                    preferred_element_type=jnp.float32) + vblk(VR_B_OUT, B, D)
    fused = _layer_norm(fused, vblk(VR_G_OUT, B, D), vblk(VR_BE_OUT, B, D))

    # ---- confidence_estimator: Linear -> ReLU -> Linear -> Sigmoid ----
    c = jnp.maximum(jnp.dot(fused, wblk(OFF_W_C1, D, Dh),
                            preferred_element_type=jnp.float32) + vblk(VR_B_C1, B, Dh), 0.0)
    c = jnp.dot(c, wblk(OFF_W_C2, Dh, 1),
                preferred_element_type=jnp.float32) + vblk(VR_B_C2, B, 1)
    conf = pl.reciprocal(1.0 + jnp.exp(-c), approx=True)                             # [B, 1]

    # ---- build packed output slab in registers, single unmasked lane-dense store ----
    attn_mean = attn_acc * (1.0 / L)                                                 # [B, M]
    pad = jnp.zeros((B, LANES - D - M - 1), jnp.float32)
    out_ref[...] = jnp.concatenate([fused, attn_mean, conf, pad], axis=-1)


def make_params(key):
    """Deterministic synthetic parameters (shapes match MemoryFusionNetwork.__init__)."""
    D, Dm, L, Dh = MODEL_DIM, MEM_DIM, NUM_LAYERS, HALF_DIM
    ks = jax.random.split(key, 20)

    def nrm(k, shape, s=0.1):
        return jax.random.normal(k, shape, jnp.float32) * s

    i = iter(range(20))
    p = {
        "w_mp": nrm(ks[next(i)], (Dm, D)),
        "b_mp": nrm(ks[next(i)], (1, D)),
        "g_mp": jnp.ones((1, D), jnp.float32),
        "be_mp": jnp.zeros((1, D), jnp.float32),
        "w_k": nrm(ks[next(i)], (D, D)),
        "b_k": nrm(ks[next(i)], (1, D)),
        "w_v": nrm(ks[next(i)], (D, D)),
        "b_v": nrm(ks[next(i)], (1, D)),
        "aqw": nrm(ks[next(i)], (L, D, D)),
        "aqb": nrm(ks[next(i)], (L, 1, D)),
        "akw": nrm(ks[next(i)], (L, D, D)),
        "akb": nrm(ks[next(i)], (L, 1, D)),
        "avw": nrm(ks[next(i)], (L, D, D)),
        "avb": nrm(ks[next(i)], (L, 1, D)),
        "aow": nrm(ks[next(i)], (L, D, D)),
        "aob": nrm(ks[next(i)], (L, 1, D)),
        "alng": jnp.ones((L, 1, D), jnp.float32),
        "alnb": jnp.zeros((L, 1, D), jnp.float32),
        "w_out": nrm(ks[next(i)], (D, D)),
        "b_out": nrm(ks[next(i)], (1, D)),
        "g_out": jnp.ones((1, D), jnp.float32),
        "be_out": jnp.zeros((1, D), jnp.float32),
        "w_c1": nrm(ks[next(i)], (D, Dh)),
        "b_c1": nrm(ks[next(i)], (1, Dh)),
        "w_c2": nrm(ks[next(i)], (Dh, 1)),
        "b_c2": nrm(ks[next(i)], (1, 1)),
    }
    return p


def pack_params(p):
    """Host-side one-time fusion/packing of all parameters into two lane-dense buffers."""
    D, Dm, L, Dh, H, hd = MODEL_DIM, MEM_DIM, NUM_LAYERS, HALF_DIM, NUM_HEADS, HEAD_DIM
    scale = 1.0 / float(np.sqrt(hd))

    def pad_cols(w):
        w = np.asarray(w, np.float32)
        return np.pad(w, ((0, 0), (0, LANES - w.shape[1])))

    # Compose key/value projections with the per-layer MHA k/v in-projections
    # (two consecutive Linears, no nonlinearity between them):
    #   kh_l = keys @ akw_l + akb_l = pm @ (w_k @ akw_l) + (b_k @ akw_l + akb_l)
    kv_w, kv_b = [], []
    for l in range(L):
        kv_w += [np.asarray(p["w_k"] @ p["akw"][l]), np.asarray(p["w_v"] @ p["avw"][l])]
        kv_b += [np.asarray(p["b_k"] @ p["akw"][l] + p["akb"][l]),
                 np.asarray(p["b_v"] @ p["avw"][l] + p["avb"][l])]
    w_kv = np.concatenate(kv_w, axis=1)          # [D, 4D] lane blocks [k0|v0|k1|v1]
    b_kv = np.concatenate(kv_b, axis=1)          # [1, 4D]

    # Extended per-layer q in-proj: scaled and lane-shifted into layer-l's k block.
    aqw_ext, aqb_ext = [], []
    for l in range(L):
        w = np.zeros((D, D4), np.float32)
        w[:, 2 * l * D: 2 * l * D + D] = np.asarray(p["aqw"][l]) * scale
        aqw_ext.append(w)
        b = np.zeros((1, D4), np.float32)
        b[:, 2 * l * D: 2 * l * D + D] = np.asarray(p["aqb"][l]) * scale
        aqb_ext.append(b)

    # Head-segment matrices covering the full 128 lanes:
    #   seg_k[d, h] = 1 iff lane d sits in a k block and belongs to head h (used for scores)
    #   seg_tv[h, d] = 1 iff lane d sits in a v block and belongs to head h (used for context)
    seg_k = np.zeros((D4, H), np.float32)
    seg_tv = np.zeros((H, D4), np.float32)
    for l in range(L):
        ks, vs = 2 * l * D, 2 * l * D + D
        for d in range(D):
            seg_k[ks + d, d // hd] = 1.0
            seg_tv[d // hd, vs + d] = 1.0

    # Extended per-layer out-proj: consumes the full 128-lane ctx row, selecting layer-l v block.
    aow_ext = []
    for l in range(L):
        w = np.zeros((D4, D), np.float32)
        w[2 * l * D + D: 2 * l * D + 2 * D, :] = np.asarray(p["aow"][l])
        aow_ext.append(w)

    w_blocks = ([np.asarray(p["w_mp"]), w_kv]
                + aqw_ext + [seg_k, seg_tv] + aow_ext
                + [np.asarray(p["w_out"]), np.asarray(p["w_c1"]), np.asarray(p["w_c2"])])
    w_pack = np.concatenate([pad_cols(w) for w in w_blocks], axis=0)
    assert w_pack.shape == (W_ROWS, LANES)

    # Bias / LayerNorm vectors: pre-replicate each to V_REP sublanes so the kernel never
    # issues a broadcast (plain aligned vector loads of the exact row-count needed).
    v_rows = ([p["b_mp"], p["g_mp"], p["be_mp"], b_kv]
              + aqb_ext
              + [p["aob"][l] for l in range(L)]
              + [p["alng"][l] for l in range(L)]
              + [p["alnb"][l] for l in range(L)]
              + [p["b_out"], p["g_out"], p["be_out"], p["b_c1"], p["b_c2"]])
    v_pack = np.concatenate(
        [np.tile(pad_cols(np.asarray(v).reshape(1, -1)), (V_REP, 1)) for v in v_rows], axis=0)
    assert v_pack.shape == (V_PACK_ROWS, LANES)
    return jnp.asarray(w_pack), jnp.asarray(v_pack)


def memory_fusion_forward(query_states, memory_embeddings, w_pack, v_pack):
    B, M = memory_embeddings.shape[0], memory_embeddings.shape[1]
    mem2d = memory_embeddings.reshape(B * M, MEM_DIM)
    args = (query_states, mem2d, w_pack, v_pack)   # 4 input DMAs total

    # Whole problem fits comfortably in VMEM -> no grid, no per-step bookkeeping; every array is
    # one full-extent VMEM block.  For production batch sizes: grid over the batch dimension
    # with large sublane-aligned tiles (sized for 64 MiB VMEM on v7x, 128 MiB on v5e/v6e), give
    # w_pack/v_pack constant index_maps (lambda ...: (0, 0)) so weights stay VMEM-resident, and
    # mark the batch axis "parallel" to engage both v7x TensorCores.
    vmem = lambda: pl.BlockSpec(memory_space=pltpu.MemorySpace.VMEM)
    packed = pl.pallas_call(
        fusion_kernel,
        out_shape=jax.ShapeDtypeStruct((B, LANES), jnp.float32),
        in_specs=[vmem() for _ in args],
        out_specs=vmem(),
    )(*args)

    fused = packed[:, :MODEL_DIM]
    attn = packed[:, MODEL_DIM:MODEL_DIM + M]
    conf = packed[:, MODEL_DIM + M:MODEL_DIM + M + 1]
    return {
        "fused_states": fused,
        "attention_weights": attn,
        "confidence": conf,
        "fusion_metadata": {"num_memories": M, "fusion_strategy": "attention"},
    }


def reference_forward(q, mem, p):
    """Pure-JAX reference replicating the PyTorch forward (eval mode), unfused params."""
    def ln(x, g, b):
        mu = x.mean(-1, keepdims=True)
        var = ((x - mu) ** 2).mean(-1, keepdims=True)
        return (x - mu) / jnp.sqrt(var + LN_EPS) * g + b

    pm = jnp.maximum(ln(mem @ p["w_mp"] + p["b_mp"], p["g_mp"], p["be_mp"]), 0.0)
    keys = pm @ p["w_k"] + p["b_k"]
    vals = pm @ p["w_v"] + p["b_v"]
    B, M, D = keys.shape
    H, hd = NUM_HEADS, HEAD_DIM
    scale = 1.0 / float(np.sqrt(hd))

    fusion_state = q
    attn_hist = []
    for l in range(NUM_LAYERS):
        qh = (fusion_state @ p["aqw"][l] + p["aqb"][l]).reshape(B, H, hd)
        kh = (keys @ p["akw"][l] + p["akb"][l]).reshape(B, M, H, hd)
        vh = (vals @ p["avw"][l] + p["avb"][l]).reshape(B, M, H, hd)
        sc = jnp.einsum("bhd,bmhd->bhm", qh, kh) * scale
        w = jax.nn.softmax(sc, axis=-1)
        ctx = jnp.einsum("bhm,bmhd->bhd", w, vh).reshape(B, D)
        attn_out = ctx @ p["aow"][l] + p["aob"][l]
        attn_hist.append(jax.nn.softmax(w.mean(axis=1), axis=-1))
        fusion_state = ln(fusion_state + attn_out, p["alng"][l], p["alnb"][l])

    fused = ln(fusion_state @ p["w_out"] + p["b_out"], p["g_out"], p["be_out"])
    c = jnp.maximum(fused @ p["w_c1"] + p["b_c1"], 0.0)
    conf = jax.nn.sigmoid(c @ p["w_c2"] + p["b_c2"])
    return fused, jnp.stack(attn_hist).mean(0), conf


if __name__ == "__main__":
    key = jax.random.PRNGKey(0)
    kq, km, kp = jax.random.split(key, 3)
    query_states = jax.random.normal(kq, (BATCH, MODEL_DIM), jnp.float32)
    memory_embeddings = jax.random.normal(km, (BATCH, NUM_MEM, MEM_DIM), jnp.float32)
    params = make_params(kp)
    w_pack, v_pack = pack_params(params)

    out = memory_fusion_forward(query_states, memory_embeddings, w_pack, v_pack)
    jax.block_until_ready(out["fused_states"])

    ref_fused, ref_attn, ref_conf = reference_forward(query_states, memory_embeddings, params)
    # approx-EUP reciprocals in the softmax/sigmoid paths add ~1e-4-level relative error;
    # 2e-3 keeps the check meaningful with headroom.
    np.testing.assert_allclose(np.asarray(out["fused_states"]), np.asarray(ref_fused),
                               rtol=2e-3, atol=2e-3)
    np.testing.assert_allclose(np.asarray(out["attention_weights"]), np.asarray(ref_attn),
                               rtol=2e-3, atol=2e-3)
    np.testing.assert_allclose(np.asarray(out["confidence"]), np.asarray(ref_conf),
                               rtol=2e-3, atol=2e-3)
    print("KERNEL_OK")
</pallas_src>

<mosaic_0001>
module attributes {stable_mosaic.version = 11 : i64} {
  func.func @fusion_kernel(%arg0: memref<2x32xf32, #tpu.memory_space<vmem>>, %arg1: memref<16x16xf32, #tpu.memory_space<vmem>>, %arg2: memref<584x128xf32, #tpu.memory_space<vmem>>, %arg3: memref<272x128xf32, #tpu.memory_space<vmem>>, %arg4: memref<2x128xf32, #tpu.memory_space<vmem>>) attributes {dimension_semantics = [], scalar_prefetch = 0 : i64, scratch_operands = 0 : i64, tpu.core_type = #tpu.core_type<tc>} {
    %c0 = arith.constant 0 : index
    %c0_0 = arith.constant 0 : index
    %0 = vector.load %arg0[%c0, %c0_0] : memref<2x32xf32, #tpu.memory_space<vmem>>, vector<2x32xf32>
    %c0_1 = arith.constant 0 : index
    %c0_2 = arith.constant 0 : index
    %1 = vector.load %arg1[%c0_1, %c0_2] : memref<16x16xf32, #tpu.memory_space<vmem>>, vector<16x16xf32>
    %c0_3 = arith.constant 0 : index
    %c0_4 = arith.constant 0 : index
    %2 = vector.load %arg2[%c0_3, %c0_4] : memref<584x128xf32, #tpu.memory_space<vmem>>, vector<16x32xf32>
    %cst = arith.constant dense<0.000000e+00> : vector<16x32xf32>
    %3 = tpu.matmul %1, %2, %cst {dimension_numbers = #tpu.dot_dimension_numbers<[1], [0], [0], [1], [0, 0, 1, 1], [], []>} : vector<16x16xf32>, vector<16x32xf32>, vector<16x32xf32> -> vector<16x32xf32>
    %c0_5 = arith.constant 0 : index
    %c0_6 = arith.constant 0 : index
    %4 = vector.load %arg3[%c0_5, %c0_6] : memref<272x128xf32, #tpu.memory_space<vmem>>, vector<16x32xf32>
    %5 = arith.addf %3, %4 : vector<16x32xf32>
    %c16 = arith.constant 16 : index
    %c0_7 = arith.constant 0 : index
    %6 = vector.load %arg3[%c16, %c0_7] : memref<272x128xf32, #tpu.memory_space<vmem>>, vector<16x32xf32>
    %c32 = arith.constant 32 : index
    %c0_8 = arith.constant 0 : index
    %7 = vector.load %arg3[%c32, %c0_8] : memref<272x128xf32, #tpu.memory_space<vmem>>, vector<16x32xf32>
    %cst_9 = arith.constant dense<0.000000e+00> : vector<16xf32>
    %8 = vector.multi_reduction <add>, %5, %cst_9 [1] : vector<16x32xf32> to vector<16xf32>
    %9 = vector.shape_cast %8 : vector<16xf32> to vector<16x1xf32>
    %cst_10 = arith.constant 3.200000e+01 : f32
    %10 = vector.broadcast %cst_10 : f32 to vector<16x1xf32>
    %11 = arith.divf %9, %10 : vector<16x1xf32>
    %12 = arith.mulf %5, %5 : vector<16x32xf32>
    %cst_11 = arith.constant dense<0.000000e+00> : vector<16xf32>
    %13 = vector.multi_reduction <add>, %12, %cst_11 [1] : vector<16x32xf32> to vector<16xf32>
    %14 = vector.shape_cast %13 : vector<16xf32> to vector<16x1xf32>
    %cst_12 = arith.constant 3.200000e+01 : f32
    %15 = vector.broadcast %cst_12 : f32 to vector<16x1xf32>
    %16 = arith.divf %14, %15 : vector<16x1xf32>
    %17 = arith.mulf %11, %11 : vector<16x1xf32>
    %18 = arith.subf %16, %17 : vector<16x1xf32>
    %19 = vector.broadcast %11 : vector<16x1xf32> to vector<16x32xf32>
    %20 = arith.subf %5, %19 : vector<16x32xf32>
    %cst_13 = arith.constant 9.99999974E-6 : f32
    %21 = vector.broadcast %cst_13 : f32 to vector<16x1xf32>
    %22 = arith.addf %18, %21 : vector<16x1xf32>
    %23 = math.rsqrt %22 : vector<16x1xf32>
    %24 = vector.broadcast %23 : vector<16x1xf32> to vector<16x32xf32>
    %25 = arith.mulf %20, %24 : vector<16x32xf32>
    %26 = arith.mulf %25, %6 : vector<16x32xf32>
    %27 = arith.addf %26, %7 : vector<16x32xf32>
    %cst_14 = arith.constant 0.000000e+00 : f32
    %28 = vector.broadcast %cst_14 : f32 to vector<16x32xf32>
    %29 = arith.maximumf %27, %28 : vector<16x32xf32>
    %c16_15 = arith.constant 16 : index
    %c0_16 = arith.constant 0 : index
    %30 = vector.load %arg2[%c16_15, %c0_16] : memref<584x128xf32, #tpu.memory_space<vmem>>, vector<32x128xf32>
    %cst_17 = arith.constant dense<0.000000e+00> : vector<16x128xf32>
    %31 = tpu.matmul %29, %30, %cst_17 {dimension_numbers = #tpu.dot_dimension_numbers<[1], [0], [0], [1], [0, 0, 1, 1], [], []>} : vector<16x32xf32>, vector<32x128xf32>, vector<16x128xf32> -> vector<16x128xf32>
    %c48 = arith.constant 48 : index
    %c0_18 = arith.constant 0 : index
    %32 = vector.load %arg3[%c48, %c0_18] : memref<272x128xf32, #tpu.memory_space<vmem>>, vector<16x128xf32>
    %33 = arith.addf %31, %32 : vector<16x128xf32>
    %34 = vector.shape_cast %33 : vector<16x128xf32> to vector<2x8x128xf32>
    %c112 = arith.constant 112 : index
    %c0_19 = arith.constant 0 : index
    %35 = vector.load %arg2[%c112, %c0_19] : memref<584x128xf32, #tpu.memory_space<vmem>>, vector<128x8xf32>
    %c240 = arith.constant 240 : index
    %c0_20 = arith.constant 0 : index
    %36 = vector.load %arg2[%c240, %c0_20] : memref<584x128xf32, #tpu.memory_space<vmem>>, vector<8x128xf32>
    %cst_21 = arith.constant 0.000000e+00 : f32
    %37 = vector.broadcast %cst_21 : f32 to vector<2x8xf32>
    %c48_22 = arith.constant 48 : index
    %c0_23 = arith.constant 0 : index
    %38 = vector.load %arg2[%c48_22, %c0_23] : memref<584x128xf32, #tpu.memory_space<vmem>>, vector<32x128xf32>
    %cst_24 = arith.constant dense<0.000000e+00> : vector<2x128xf32>
    %39 = tpu.matmul %0, %38, %cst_24 {dimension_numbers = #tpu.dot_dimension_numbers<[1], [0], [0], [1], [0, 0, 1, 1], [], []>} : vector<2x32xf32>, vector<32x128xf32>, vector<2x128xf32> -> vector<2x128xf32>
    %c64 = arith.constant 64 : index
    %c0_25 = arith.constant 0 : index
    %40 = vector.load %arg3[%c64, %c0_25] : memref<272x128xf32, #tpu.memory_space<vmem>>, vector<2x128xf32>
    %41 = arith.addf %39, %40 : vector<2x128xf32>
    %42 = vector.shape_cast %41 : vector<2x128xf32> to vector<2x1x128xf32>
    %43 = vector.broadcast %42 : vector<2x1x128xf32> to vector<2x8x128xf32>
    %44 = arith.mulf %43, %34 : vector<2x8x128xf32>
    %45 = vector.shape_cast %44 : vector<2x8x128xf32> to vector<16x128xf32>
    %cst_26 = arith.constant dense<0.000000e+00> : vector<16x8xf32>
    %46 = tpu.matmul %45, %35, %cst_26 {dimension_numbers = #tpu.dot_dimension_numbers<[1], [0], [0], [1], [0, 0, 1, 1], [], []>} : vector<16x128xf32>, vector<128x8xf32>, vector<16x8xf32> -> vector<16x8xf32>
    %47 = vector.shape_cast %46 : vector<16x8xf32> to vector<2x8x8xf32>
    %cst_27 = arith.constant dense<0xFF800000> : vector<2x8xf32>
    %48 = vector.multi_reduction <maximumf>, %47, %cst_27 [1] : vector<2x8x8xf32> to vector<2x8xf32>
    %49 = vector.shape_cast %48 : vector<2x8xf32> to vector<2x1x8xf32>
    %50 = vector.broadcast %49 : vector<2x1x8xf32> to vector<2x8x8xf32>
    %51 = arith.subf %47, %50 : vector<2x8x8xf32>
    %52 = math.exp %51 : vector<2x8x8xf32>
    %cst_28 = arith.constant dense<0.000000e+00> : vector<2x8xf32>
    %53 = vector.multi_reduction <add>, %52, %cst_28 [1] : vector<2x8x8xf32> to vector<2x8xf32>
    %54 = vector.shape_cast %53 : vector<2x8xf32> to vector<2x1x8xf32>
    %55 = tpu.reciprocal %54 {approx = true} : vector<2x1x8xf32> -> vector<2x1x8xf32>
    %56 = vector.broadcast %55 : vector<2x1x8xf32> to vector<2x8x8xf32>
    %57 = arith.mulf %52, %56 : vector<2x8x8xf32>
    %58 = vector.shape_cast %57 : vector<2x8x8xf32> to vector<16x8xf32>
    %cst_29 = arith.constant dense<0.000000e+00> : vector<16x128xf32>
    %59 = tpu.matmul %58, %36, %cst_29 {dimension_numbers = #tpu.dot_dimension_numbers<[1], [0], [0], [1], [0, 0, 1, 1], [], []>} : vector<16x8xf32>, vector<8x128xf32>, vector<16x128xf32> -> vector<16x128xf32>
    %60 = vector.shape_cast %59 : vector<16x128xf32> to vector<2x8x128xf32>
    %61 = arith.mulf %60, %34 : vector<2x8x128xf32>
    %cst_30 = arith.constant dense<0.000000e+00> : vector<2x128xf32>
    %62 = vector.multi_reduction <add>, %61, %cst_30 [1] : vector<2x8x128xf32> to vector<2x128xf32>
    %c248 = arith.constant 248 : index
    %c0_31 = arith.constant 0 : index
    %63 = vector.load %arg2[%c248, %c0_31] : memref<584x128xf32, #tpu.memory_space<vmem>>, vector<128x32xf32>
    %cst_32 = arith.constant dense<0.000000e+00> : vector<2x32xf32>
    %64 = tpu.matmul %62, %63, %cst_32 {dimension_numbers = #tpu.dot_dimension_numbers<[1], [0], [0], [1], [0, 0, 1, 1], [], []>} : vector<2x128xf32>, vector<128x32xf32>, vector<2x32xf32> -> vector<2x32xf32>
    %c96 = arith.constant 96 : index
    %c0_33 = arith.constant 0 : index
    %65 = vector.load %arg3[%c96, %c0_33] : memref<272x128xf32, #tpu.memory_space<vmem>>, vector<2x32xf32>
    %66 = arith.addf %64, %65 : vector<2x32xf32>
    %cst_34 = arith.constant dense<0.000000e+00> : vector<2x8xf32>
    %67 = vector.multi_reduction <add>, %57, %cst_34 [2] : vector<2x8x8xf32> to vector<2x8xf32>
    %cst_35 = arith.constant 1.250000e-01 : f32
    %68 = vector.broadcast %cst_35 : f32 to vector<2x8xf32>
    %69 = arith.mulf %67, %68 : vector<2x8xf32>
    %70 = math.exp %69 : vector<2x8xf32>
    %cst_36 = arith.constant dense<0.000000e+00> : vector<2xf32>
    %71 = vector.multi_reduction <add>, %70, %cst_36 [1] : vector<2x8xf32> to vector<2xf32>
    %72 = vector.shape_cast %71 : vector<2xf32> to vector<2x1xf32>
    %73 = tpu.reciprocal %72 {approx = true} : vector<2x1xf32> -> vector<2x1xf32>
    %74 = vector.broadcast %73 : vector<2x1xf32> to vector<2x8xf32>
    %75 = arith.mulf %70, %74 : vector<2x8xf32>
    %76 = arith.addf %37, %75 : vector<2x8xf32>
    %77 = arith.addf %0, %66 : vector<2x32xf32>
    %c128 = arith.constant 128 : index
    %c0_37 = arith.constant 0 : index
    %78 = vector.load %arg3[%c128, %c0_37] : memref<272x128xf32, #tpu.memory_space<vmem>>, vector<2x32xf32>
    %c160 = arith.constant 160 : index
    %c0_38 = arith.constant 0 : index
    %79 = vector.load %arg3[%c160, %c0_38] : memref<272x128xf32, #tpu.memory_space<vmem>>, vector<2x32xf32>
    %cst_39 = arith.constant dense<0.000000e+00> : vector<2xf32>
    %80 = vector.multi_reduction <add>, %77, %cst_39 [1] : vector<2x32xf32> to vector<2xf32>
    %81 = vector.shape_cast %80 : vector<2xf32> to vector<2x1xf32>
    %cst_40 = arith.constant 3.200000e+01 : f32
    %82 = vector.broadcast %cst_40 : f32 to vector<2x1xf32>
    %83 = arith.divf %81, %82 : vector<2x1xf32>
    %84 = arith.mulf %77, %77 : vector<2x32xf32>
    %cst_41 = arith.constant dense<0.000000e+00> : vector<2xf32>
    %85 = vector.multi_reduction <add>, %84, %cst_41 [1] : vector<2x32xf32> to vector<2xf32>
    %86 = vector.shape_cast %85 : vector<2xf32> to vector<2x1xf32>
    %cst_42 = arith.constant 3.200000e+01 : f32
    %87 = vector.broadcast %cst_42 : f32 to vector<2x1xf32>
    %88 = arith.divf %86, %87 : vector<2x1xf32>
    %89 = arith.mulf %83, %83 : vector<2x1xf32>
    %90 = arith.subf %88, %89 : vector<2x1xf32>
    %91 = vector.broadcast %83 : vector<2x1xf32> to vector<2x32xf32>
    %92 = arith.subf %77, %91 : vector<2x32xf32>
    %cst_43 = arith.constant 9.99999974E-6 : f32
    %93 = vector.broadcast %cst_43 : f32 to vector<2x1xf32>
    %94 = arith.addf %90, %93 : vector<2x1xf32>
    %95 = math.rsqrt %94 : vector<2x1xf32>
    %96 = vector.broadcast %95 : vector<2x1xf32> to vector<2x32xf32>
    %97 = arith.mulf %92, %96 : vector<2x32xf32>
    %98 = arith.mulf %97, %78 : vector<2x32xf32>
    %99 = arith.addf %98, %79 : vector<2x32xf32>
    %c80 = arith.constant 80 : index
    %c0_44 = arith.constant 0 : index
    %100 = vector.load %arg2[%c80, %c0_44] : memref<584x128xf32, #tpu.memory_space<vmem>>, vector<32x128xf32>
    %cst_45 = arith.constant dense<0.000000e+00> : vector<2x128xf32>
    %101 = tpu.matmul %99, %100, %cst_45 {dimension_numbers = #tpu.dot_dimension_numbers<[1], [0], [0], [1], [0, 0, 1, 1], [], []>} : vector<2x32xf32>, vector<32x128xf32>, vector<2x128xf32> -> vector<2x128xf32>
    %c80_46 = arith.constant 80 : index
    %c0_47 = arith.constant 0 : index
    %102 = vector.load %arg3[%c80_46, %c0_47] : memref<272x128xf32, #tpu.memory_space<vmem>>, vector<2x128xf32>
    %103 = arith.addf %101, %102 : vector<2x128xf32>
    %104 = vector.shape_cast %103 : vector<2x128xf32> to vector<2x1x128xf32>
    %105 = vector.broadcast %104 : vector<2x1x128xf32> to vector<2x8x128xf32>
    %106 = arith.mulf %105, %34 : vector<2x8x128xf32>
    %107 = vector.shape_cast %106 : vector<2x8x128xf32> to vector<16x128xf32>
    %cst_48 = arith.constant dense<0.000000e+00> : vector<16x8xf32>
    %108 = tpu.matmul %107, %35, %cst_48 {dimension_numbers = #tpu.dot_dimension_numbers<[1], [0], [0], [1], [0, 0, 1, 1], [], []>} : vector<16x128xf32>, vector<128x8xf32>, vector<16x8xf32> -> vector<16x8xf32>
    %109 = vector.shape_cast %108 : vector<16x8xf32> to vector<2x8x8xf32>
    %cst_49 = arith.constant dense<0xFF800000> : vector<2x8xf32>
    %110 = vector.multi_reduction <maximumf>, %109, %cst_49 [1] : vector<2x8x8xf32> to vector<2x8xf32>
    %111 = vector.shape_cast %110 : vector<2x8xf32> to vector<2x1x8xf32>
    %112 = vector.broadcast %111 : vector<2x1x8xf32> to vector<2x8x8xf32>
    %113 = arith.subf %109, %112 : vector<2x8x8xf32>
    %114 = math.exp %113 : vector<2x8x8xf32>
    %cst_50 = arith.constant dense<0.000000e+00> : vector<2x8xf32>
    %115 = vector.multi_reduction <add>, %114, %cst_50 [1] : vector<2x8x8xf32> to vector<2x8xf32>
    %116 = vector.shape_cast %115 : vector<2x8xf32> to vector<2x1x8xf32>
    %117 = tpu.reciprocal %116 {approx = true} : vector<2x1x8xf32> -> vector<2x1x8xf32>
    %118 = vector.broadcast %117 : vector<2x1x8xf32> to vector<2x8x8xf32>
    %119 = arith.mulf %114, %118 : vector<2x8x8xf32>
    %120 = vector.shape_cast %119 : vector<2x8x8xf32> to vector<16x8xf32>
    %cst_51 = arith.constant dense<0.000000e+00> : vector<16x128xf32>
    %121 = tpu.matmul %120, %36, %cst_51 {dimension_numbers = #tpu.dot_dimension_numbers<[1], [0], [0], [1], [0, 0, 1, 1], [], []>} : vector<16x8xf32>, vector<8x128xf32>, vector<16x128xf32> -> vector<16x128xf32>
    %122 = vector.shape_cast %121 : vector<16x128xf32> to vector<2x8x128xf32>
    %123 = arith.mulf %122, %34 : vector<2x8x128xf32>
    %cst_52 = arith.constant dense<0.000000e+00> : vector<2x128xf32>
    %124 = vector.multi_reduction <add>, %123, %cst_52 [1] : vector<2x8x128xf32> to vector<2x128xf32>
    %c376 = arith.constant 376 : index
    %c0_53 = arith.constant 0 : index
    %125 = vector.load %arg2[%c376, %c0_53] : memref<584x128xf32, #tpu.memory_space<vmem>>, vector<128x32xf32>
    %cst_54 = arith.constant dense<0.000000e+00> : vector<2x32xf32>
    %126 = tpu.matmul %124, %125, %cst_54 {dimension_numbers = #tpu.dot_dimension_numbers<[1], [0], [0], [1], [0, 0, 1, 1], [], []>} : vector<2x128xf32>, vector<128x32xf32>, vector<2x32xf32> -> vector<2x32xf32>
    %c112_55 = arith.constant 112 : index
    %c0_56 = arith.constant 0 : index
    %127 = vector.load %arg3[%c112_55, %c0_56] : memref<272x128xf32, #tpu.memory_space<vmem>>, vector<2x32xf32>
    %128 = arith.addf %126, %127 : vector<2x32xf32>
    %cst_57 = arith.constant dense<0.000000e+00> : vector<2x8xf32>
    %129 = vector.multi_reduction <add>, %119, %cst_57 [2] : vector<2x8x8xf32> to vector<2x8xf32>
    %cst_58 = arith.constant 1.250000e-01 : f32
    %130 = vector.broadcast %cst_58 : f32 to vector<2x8xf32>
    %131 = arith.mulf %129, %130 : vector<2x8xf32>
    %132 = math.exp %131 : vector<2x8xf32>
    %cst_59 = arith.constant dense<0.000000e+00> : vector<2xf32>
    %133 = vector.multi_reduction <add>, %132, %cst_59 [1] : vector<2x8xf32> to vector<2xf32>
    %134 = vector.shape_cast %133 : vector<2xf32> to vector<2x1xf32>
    %135 = tpu.reciprocal %134 {approx = true} : vector<2x1xf32> -> vector<2x1xf32>
    %136 = vector.broadcast %135 : vector<2x1xf32> to vector<2x8xf32>
    %137 = arith.mulf %132, %136 : vector<2x8xf32>
    %138 = arith.addf %76, %137 : vector<2x8xf32>
    %139 = arith.addf %99, %128 : vector<2x32xf32>
    %c144 = arith.constant 144 : index
    %c0_60 = arith.constant 0 : index
    %140 = vector.load %arg3[%c144, %c0_60] : memref<272x128xf32, #tpu.memory_space<vmem>>, vector<2x32xf32>
    %c176 = arith.constant 176 : index
    %c0_61 = arith.constant 0 : index
    %141 = vector.load %arg3[%c176, %c0_61] : memref<272x128xf32, #tpu.memory_space<vmem>>, vector<2x32xf32>
    %cst_62 = arith.constant dense<0.000000e+00> : vector<2xf32>
    %142 = vector.multi_reduction <add>, %139, %cst_62 [1] : vector<2x32xf32> to vector<2xf32>
    %143 = vector.shape_cast %142 : vector<2xf32> to vector<2x1xf32>
    %cst_63 = arith.constant 3.200000e+01 : f32
    %144 = vector.broadcast %cst_63 : f32 to vector<2x1xf32>
    %145 = arith.divf %143, %144 : vector<2x1xf32>
    %146 = arith.mulf %139, %139 : vector<2x32xf32>
    %cst_64 = arith.constant dense<0.000000e+00> : vector<2xf32>
    %147 = vector.multi_reduction <add>, %146, %cst_64 [1] : vector<2x32xf32> to vector<2xf32>
    %148 = vector.shape_cast %147 : vector<2xf32> to vector<2x1xf32>
    %cst_65 = arith.constant 3.200000e+01 : f32
    %149 = vector.broadcast %cst_65 : f32 to vector<2x1xf32>
    %150 = arith.divf %148, %149 : vector<2x1xf32>
    %151 = arith.mulf %145, %145 : vector<2x1xf32>
    %152 = arith.subf %150, %151 : vector<2x1xf32>
    %153 = vector.broadcast %145 : vector<2x1xf32> to vector<2x32xf32>
    %154 = arith.subf %139, %153 : vector<2x32xf32>
    %cst_66 = arith.constant 9.99999974E-6 : f32
    %155 = vector.broadcast %cst_66 : f32 to vector<2x1xf32>
    %156 = arith.addf %152, %155 : vector<2x1xf32>
    %157 = math.rsqrt %156 : vector<2x1xf32>
    %158 = vector.broadcast %157 : vector<2x1xf32> to vector<2x32xf32>
    %159 = arith.mulf %154, %158 : vector<2x32xf32>
    %160 = arith.mulf %159, %140 : vector<2x32xf32>
    %161 = arith.addf %160, %141 : vector<2x32xf32>
    %c504 = arith.constant 504 : index
    %c0_67 = arith.constant 0 : index
    %162 = vector.load %arg2[%c504, %c0_67] : memref<584x128xf32, #tpu.memory_space<vmem>>, vector<32x32xf32>
    %cst_68 = arith.constant dense<0.000000e+00> : vector<2x32xf32>
    %163 = tpu.matmul %161, %162, %cst_68 {dimension_numbers = #tpu.dot_dimension_numbers<[1], [0], [0], [1], [0, 0, 1, 1], [], []>} : vector<2x32xf32>, vector<32x32xf32>, vector<2x32xf32> -> vector<2x32xf32>
    %c192 = arith.constant 192 : index
    %c0_69 = arith.constant 0 : index
    %164 = vector.load %arg3[%c192, %c0_69] : memref<272x128xf32, #tpu.memory_space<vmem>>, vector<2x32xf32>
    %165 = arith.addf %163, %164 : vector<2x32xf32>
    %c208 = arith.constant 208 : index
    %c0_70 = arith.constant 0 : index
    %166 = vector.load %arg3[%c208, %c0_70] : memref<272x128xf32, #tpu.memory_space<vmem>>, vector<2x32xf32>
    %c224 = arith.constant 224 : index
    %c0_71 = arith.constant 0 : index
    %167 = vector.load %arg3[%c224, %c0_71] : memref<272x128xf32, #tpu.memory_space<vmem>>, vector<2x32xf32>
    %cst_72 = arith.constant dense<0.000000e+00> : vector<2xf32>
    %168 = vector.multi_reduction <add>, %165, %cst_72 [1] : vector<2x32xf32> to vector<2xf32>
    %169 = vector.shape_cast %168 : vector<2xf32> to vector<2x1xf32>
    %cst_73 = arith.constant 3.200000e+01 : f32
    %170 = vector.broadcast %cst_73 : f32 to vector<2x1xf32>
    %171 = arith.divf %169, %170 : vector<2x1xf32>
    %172 = arith.mulf %165, %165 : vector<2x32xf32>
    %cst_74 = arith.constant dense<0.000000e+00> : vector<2xf32>
    %173 = vector.multi_reduction <add>, %172, %cst_74 [1] : vector<2x32xf32> to vector<2xf32>
    %174 = vector.shape_cast %173 : vector<2xf32> to vector<2x1xf32>
    %cst_75 = arith.constant 3.200000e+01 : f32
    %175 = vector.broadcast %cst_75 : f32 to vector<2x1xf32>
    %176 = arith.divf %174, %175 : vector<2x1xf32>
    %177 = arith.mulf %171, %171 : vector<2x1xf32>
    %178 = arith.subf %176, %177 : vector<2x1xf32>
    %179 = vector.broadcast %171 : vector<2x1xf32> to vector<2x32xf32>
    %180 = arith.subf %165, %179 : vector<2x32xf32>
    %cst_76 = arith.constant 9.99999974E-6 : f32
    %181 = vector.broadcast %cst_76 : f32 to vector<2x1xf32>
    %182 = arith.addf %178, %181 : vector<2x1xf32>
    %183 = math.rsqrt %182 : vector<2x1xf32>
    %184 = vector.broadcast %183 : vector<2x1xf32> to vector<2x32xf32>
    %185 = arith.mulf %180, %184 : vector<2x32xf32>
    %186 = arith.mulf %185, %166 : vector<2x32xf32>
    %187 = arith.addf %186, %167 : vector<2x32xf32>
    %c536 = arith.constant 536 : index
    %c0_77 = arith.constant 0 : index
    %188 = vector.load %arg2[%c536, %c0_77] : memref<584x128xf32, #tpu.memory_space<vmem>>, vector<32x16xf32>
    %cst_78 = arith.constant dense<0.000000e+00> : vector<2x16xf32>
    %189 = tpu.matmul %187, %188, %cst_78 {dimension_numbers = #tpu.dot_dimension_numbers<[1], [0], [0], [1], [0, 0, 1, 1], [], []>} : vector<2x32xf32>, vector<32x16xf32>, vector<2x16xf32> -> vector<2x16xf32>
    %c240_79 = arith.constant 240 : index
    %c0_80 = arith.constant 0 : index
    %190 = vector.load %arg3[%c240_79, %c0_80] : memref<272x128xf32, #tpu.memory_space<vmem>>, vector<2x16xf32>
    %191 = arith.addf %189, %190 : vector<2x16xf32>
    %cst_81 = arith.constant 0.000000e+00 : f32
    %192 = vector.broadcast %cst_81 : f32 to vector<2x16xf32>
    %193 = arith.maximumf %191, %192 : vector<2x16xf32>
    %c568 = arith.constant 568 : index
    %c0_82 = arith.constant 0 : index
    %194 = vector.load %arg2[%c568, %c0_82] : memref<584x128xf32, #tpu.memory_space<vmem>>, vector<16x1xf32>
    %cst_83 = arith.constant dense<0.000000e+00> : vector<2x1xf32>
    %195 = tpu.matmul %193, %194, %cst_83 {dimension_numbers = #tpu.dot_dimension_numbers<[1], [0], [0], [1], [0, 0, 1, 1], [], []>} : vector<2x16xf32>, vector<16x1xf32>, vector<2x1xf32> -> vector<2x1xf32>
    %c256 = arith.constant 256 : index
    %c0_84 = arith.constant 0 : index
    %196 = vector.load %arg3[%c256, %c0_84] : memref<272x128xf32, #tpu.memory_space<vmem>>, vector<2x1xf32>
    %197 = arith.addf %195, %196 : vector<2x1xf32>
    %cst_85 = arith.constant 0.000000e+00 : f32
    %198 = vector.broadcast %cst_85 : f32 to vector<2x1xf32>
    %199 = arith.subf %198, %197 : vector<2x1xf32>
    %200 = math.exp %199 : vector<2x1xf32>
    %cst_86 = arith.constant 1.000000e+00 : f32
    %201 = vector.broadcast %cst_86 : f32 to vector<2x1xf32>
    %202 = arith.addf %201, %200 : vector<2x1xf32>
    %203 = tpu.reciprocal %202 {approx = true} : vector<2x1xf32> -> vector<2x1xf32>
    %cst_87 = arith.constant 5.000000e-01 : f32
    %204 = vector.broadcast %cst_87 : f32 to vector<2x8xf32>
    %205 = arith.mulf %138, %204 : vector<2x8xf32>
    %cst_88 = arith.constant 0.000000e+00 : f32
    %206 = vector.broadcast %cst_88 : f32 to vector<2x87xf32>
    %207 = tpu.concatenate %187, %205, %203, %206 in 1 : vector<2x32xf32>, vector<2x8xf32>, vector<2x1xf32>, vector<2x87xf32> -> vector<2x128xf32>
    %c0_89 = arith.constant 0 : index
    %c0_90 = arith.constant 0 : index
    %208 = vector.load %arg4[%c0_89, %c0_90] : memref<2x128xf32, #tpu.memory_space<vmem>>, vector<2x128xf32>
    tpu.vector_store %arg4[%c0_89, %c0_90], %207 {strides = array<i32>} : memref<2x128xf32, #tpu.memory_space<vmem>>, vector<2x128xf32>,
    return
  }
}

</mosaic_0001>

<llo_original>
// kernel: tpu_custom_call.1
$region0: #{tpu_custom_call.1}
  #allocation0 [shape = 'u32[]', space=smem, size = 0x4, offset = 0x4, fixed_abs, tag = 'smem constant byte address 0x4 - core index']
  #allocation1 [shape = 'u32[144,128]{1,0:T(1,128)}', space=vmem, size = 0x12000, scoped, tag = 'internal scratch']
  %s0 = inlined_call_operand.hbm [shape: f32[2,32], index: 0, kind: input, shape index: {}]
  %s1 = inlined_call_operand.hbm [shape: f32[16,16], index: 1, kind: input, shape index: {}]
  %s2 = inlined_call_operand.hbm [shape: f32[584,128], index: 2, kind: input, shape index: {}]
  %s3 = inlined_call_operand.hbm [shape: f32[272,128], index: 3, kind: input, shape index: {}]
  %s4 = inlined_call_operand.hbm [shape: f32[2,128], index: 4, kind: output, shape index: {}]
  %s5 = sld [smem:[#allocation0]]
  $region42: #{tpu_custom_call.1} parent=0
    _
  %s7 = ssub.s32 1, %s5
  %s8 = scalar_select 0, %s7, %s5
  $region1: #{tpu_custom_call.1} parent=0
    #allocation2 [shape = 'u8[1024]{0}', space=vmem, size = 0x400, scoped, tag = 'input window, operand 0, single buffered']
    #allocation3 [shape = 's32[1]{0}', space=sflag, size = 0x4, scoped, tag = 'scoped memory for tpu_custom_call.1']
    #allocation4 [shape = 's32[1]{0}', space=sflag, size = 0x4, scoped, tag = 'scoped memory for tpu_custom_call.1']
    #allocation5 [shape = 'u8[8192]{0}', space=vmem, size = 0x2000, scoped, tag = 'input window, operand 1, single buffered']
    #allocation6 [shape = 's32[1]{0}', space=sflag, size = 0x4, scoped, tag = 'scoped memory for tpu_custom_call.1']
    #allocation7 [shape = 'u8[299008]{0}', space=vmem, size = 0x49000, scoped, tag = 'input window, operand 2, single buffered']
    #allocation8 [shape = 'u8[139264]{0}', space=vmem, size = 0x22000, scoped, tag = 'input window, operand 3, single buffered']
    #allocation9 [shape = 's32[1]{0}', space=sflag, size = 0x4, scoped, tag = 'scoped memory for tpu_custom_call.1']
    #allocation10 [shape = 'u8[1024]{0}', space=vmem, size = 0x400, scoped, tag = 'output window, operand 0, single buffered']
    %9 = vsyncpa [#allocation3], 0
    %10 = vsyncpa [#allocation6], 0
    %11 = vsyncpa [#allocation9], 0
    %12 = vsyncpa [#allocation4], 0
    // Predicated region
    $region2: #{tpu_custom_call.1} parent=1 // pred_check
      _
    $region3: #{tpu_custom_call.1} parent=1 // pred_check_branch
      %14 = sbr.rel (0) target = $region5
    $region4: #{tpu_custom_call.1} parent=1 // pred_region
      %s16 = ssub.s32 32, 32
      %17 = vsyncadd [#allocation3], %s16
      %s19 = sshll.u32 [#allocation2], 4
      %s20 = int_to_ptr.vmem [resolvable:$true] %s19
      %22 = dma.hbm_to_vmem [thread:$0]  %s0, 32, %s20, [#allocation3]
    $region5: #{tpu_custom_call.1} parent=1 // pred_fallthru
      _
    // Predicated region
    $region6: #{tpu_custom_call.1} parent=1 // pred_check
      _
    $region7: #{tpu_custom_call.1} parent=1 // pred_check_branch
      %24 = sbr.rel (0) target = $region9
    $region8: #{tpu_custom_call.1} parent=1 // pred_region
      %s26 = ssub.s32 256, 256
      %27 = vsyncadd [#allocation6], %s26
      %s28 = sshll.u32 [#allocation5], 4
      %s29 = int_to_ptr.vmem [resolvable:$true] %s28
      %34 = dma.hbm_to_vmem [thread:$0]  %s1, 256, %s29, [#allocation6], 128, 128, 8
    $region9: #{tpu_custom_call.1} parent=1 // pred_fallthru
      _
    // Predicated region
    $region10: #{tpu_custom_call.1} parent=1 // pred_check
      _
    $region11: #{tpu_custom_call.1} parent=1 // pred_check_branch
      %36 = sbr.rel (0) target = $region13
    $region12: #{tpu_custom_call.1} parent=1 // pred_region
      %s38 = ssub.s32 9344, 9344
      %39 = vsyncadd [#allocation6], %s38
      %s40 = sshll.u32 [#allocation7], 4
      %s41 = int_to_ptr.vmem [resolvable:$true] %s40
      %46 = dma.hbm_to_vmem [thread:$0]  %s2, 9344, %s41, [#allocation6], 128, 128, 8
    $region13: #{tpu_custom_call.1} parent=1 // pred_fallthru
      _
    // Predicated region
    $region14: #{tpu_custom_call.1} parent=1 // pred_check
      _
    $region15: #{tpu_custom_call.1} parent=1 // pred_check_branch
      %48 = sbr.rel (0) target = $region17
    $region16: #{tpu_custom_call.1} parent=1 // pred_region
      %s50 = ssub.s32 4352, 4352
      %51 = vsyncadd [#allocation9], %s50
      %s52 = sshll.u32 [#allocation8], 4
      %s53 = int_to_ptr.vmem [resolvable:$true] %s52
      %58 = dma.hbm_to_vmem [thread:$0]  %s3, 4352, %s53, [#allocation9], 128, 128, 8
    $region17: #{tpu_custom_call.1} parent=1 // pred_fallthru
      _
    // Predicated region
    $region18: #{tpu_custom_call.1} parent=1 // pred_check
      _
    $region19: #{tpu_custom_call.1} parent=1 // pred_check_branch
      %60 = sbr.rel (0) target = $region21
    $region20: #{tpu_custom_call.1} parent=1 // pred_region
      %61 = dma.done [#allocation3], 32
    $region21: #{tpu_custom_call.1} parent=1 // pred_fallthru
      _
    // Predicated region
    $region22: #{tpu_custom_call.1} parent=1 // pred_check
      _
    $region23: #{tpu_custom_call.1} parent=1 // pred_check_branch
      %63 = sbr.rel (0) target = $region25
    $region24: #{tpu_custom_call.1} parent=1 // pred_region
      %64 = dma.done [#allocation6], 256
    $region25: #{tpu_custom_call.1} parent=1 // pred_fallthru
      _
    // Predicated region
    $region26: #{tpu_custom_call.1} parent=1 // pred_check
      _
    $region27: #{tpu_custom_call.1} parent=1 // pred_check_branch
      %66 = sbr.rel (0) target = $region29
    $region28: #{tpu_custom_call.1} parent=1 // pred_region
      %67 = dma.done [#allocation6], 9344
    $region29: #{tpu_custom_call.1} parent=1 // pred_fallthru
      _
    // Predicated region
    $region30: #{tpu_custom_call.1} parent=1 // pred_check
      _
    $region31: #{tpu_custom_call.1} parent=1 // pred_check_branch
      %69 = sbr.rel (0) target = $region33
    $region32: #{tpu_custom_call.1} parent=1 // pred_region
      %70 = dma.done [#allocation9], 4352
    $region33: #{tpu_custom_call.1} parent=1 // pred_fallthru
      _
    %v71 = vld [vmem:[#allocation2] sm:$0x3]
    %v72 = vld [vmem:[#allocation5] sm:$0xff]
    %v73 = vld [vmem:[#allocation5 + $0x8] sm:$0xff]
    %v74 = vld [vmem:[#allocation7] sm:$0xff]
    %v75 = vld [vmem:[#allocation7 + $0x8] sm:$0xff]
    %v76 = vld [vmem:[#allocation8] sm:$0xff]
    %v77 = vld [vmem:[#allocation8 + $0x8] sm:$0xff]
    %vm78 = vcmask 130048
    %v80 = vsel %vm78, %v72, 0
    %v83 = vsel %vm78, %v73, 0
    %85 = vmatprep.subr.mxu0 0.0
    %86 = vmatpush1.msra.mxu0 0.0
    %87 = vmatprep.subr.mxu0 0.0
    %88 = vmatpush1.msra.mxu0 0.0
    %89 = vmatprep.subr.mxu0 0.0
    %90 = vmatpush1.msra.mxu0 0.0
    %91 = vmatprep.subr.mxu0 0.0
    %92 = vmatpush1.msra.mxu0 0.0
    %93 = vmatprep.subr.mxu0 0.0
    %94 = vmatpush1.msra.mxu0 0.0
    %95 = vmatprep.subr.mxu0 0.0
    %96 = vmatpush1.msra.mxu0 0.0
    %97 = vmatprep.subr.mxu0 0.0
    %98 = vmatpush1.msra.mxu0 0.0
    %99 = vmatprep.subr.mxu0 0.0
    %100 = vmatpush1.msra.mxu0 0.0
    %101 = vmatprep.subr.mxu0 0.0
    %102 = vmatpush1.msra.mxu0 0.0
    %103 = vmatprep.subr.mxu0 0.0
    %104 = vmatpush1.msra.mxu0 0.0
    %105 = vmatprep.subr.mxu0 0.0
    %106 = vmatpush1.msra.mxu0 0.0
    %107 = vmatprep.subr.mxu0 0.0
    %108 = vmatpush1.msra.mxu0 0.0
    %109 = vmatprep.subr.mxu0 0.0
    %110 = vmatpush1.msra.mxu0 0.0
    %111 = vmatprep.subr.mxu0 0.0
    %112 = vmatpush1.msra.mxu0 0.0
    %113 = vmatprep.subr.mxu0 0.0
    %114 = vmatpush1.msra.mxu0 %v75
    %115 = vmatprep.subr.mxu0 0.0
    %116 = vmatpush1.msra.mxu0 %v74
    %117 = vmatprep.subr.mxu0 0.0
    %118 = vmatpush2.msra.mxu0 0.0
    %119 = vmatprep.subr.mxu0 0.0
    %120 = vmatpush2.msra.mxu0 0.0
    %121 = vmatprep.subr.mxu0 0.0
    %122 = vmatpush2.msra.mxu0 0.0
    %123 = vmatprep.subr.mxu0 0.0
    %124 = vmatpush2.msra.mxu0 0.0
    %125 = vmatprep.subr.mxu0 0.0
    %126 = vmatpush2.msra.mxu0 0.0
    %127 = vmatprep.subr.mxu0 0.0
    %128 = vmatpush2.msra.mxu0 0.0
    %129 = vmatprep.subr.mxu0 0.0
    %130 = vmatpush2.msra.mxu0 0.0
    %131 = vmatprep.subr.mxu0 0.0
    %132 = vmatpush2.msra.mxu0 0.0
    %133 = vmatprep.subr.mxu0 0.0
    %134 = vmatpush2.msra.mxu0 0.0
    %135 = vmatprep.subr.mxu0 0.0
    %136 = vmatpush2.msra.mxu0 0.0
    %137 = vmatprep.subr.mxu0 0.0
    %138 = vmatpush2.msra.mxu0 0.0
    %139 = vmatprep.subr.mxu0 0.0
    %140 = vmatpush2.msra.mxu0 0.0
    %141 = vmatprep.subr.mxu0 0.0
    %142 = vmatpush2.msra.mxu0 0.0
    %143 = vmatprep.subr.mxu0 0.0
    %144 = vmatpush2.msra.mxu0 0.0
    %145 = vmatprep.subr.mxu0 0.0
    %146 = vmatpush2.msra.mxu0 0.0
    %147 = vmatprep.subr.mxu0 0.0
    %148 = vmatpush2.msra.mxu0 0.0
    %149 = vmatprep.mubr.f32.mxu0 0.0
    %150 = vmatmul.mubr.f32.gmra.mxu0 %v80
    %v151 = vpop.f32.mrf.mxu0
    %v152 = vadd.f32 %v76, %v151
    %v153 = vpop.f32.mrf.mxu0
    %154 = vmatprep.mubr.f32.mxu0 0.0
    %155 = vmatmul.mubr.f32.gmra.mxu0 %v83
    %v156 = vpop.f32.mrf.mxu0
    %v157 = vadd.f32 %v77, %v156
    %v158 = vpop.f32.mrf.mxu0
    %159 = vdwg.mxu0
    %v160 = vld [vmem:[#allocation8 + $0x10] sm:$0xff]
    %v161 = vld [vmem:[#allocation8 + $0x18] sm:$0xff]
    %v162 = vld [vmem:[#allocation8 + $0x20] sm:$0xff]
    %v163 = vld [vmem:[#allocation8 + $0x28] sm:$0xff]
    %vm164 = vcmask 261120
    %v165 = vsel %vm164, %v152, 0.0
    %166 = vadd.xlane.f32.xlu0 %v165
    %v167 = vpop.xlane.xlu0 %166
    %v168 = vsel %vm164, %v157, 0.0
    %169 = vadd.xlane.f32.xlu0 %v168
    %v170 = vpop.xlane.xlu0 %169
    %v171 = vrcp.pop 32.0
    %v172 = vmul.f32 %v167, %v171
    %v173 = vmul.f32 %v170, %v171
    %v174 = vmul.f32 %v152, %v152
    %v175 = vmul.f32 %v157, %v157
    %v176 = vsel %vm164, %v174, 0.0
    %177 = vadd.xlane.f32.xlu0 %v176
    %v178 = vpop.xlane.xlu0 %177
    %v179 = vsel %vm164, %v175, 0.0
    %180 = vadd.xlane.f32.xlu0 %v179
    %v181 = vpop.xlane.xlu0 %180
    %v182 = vmul.f32 %v178, %v171
    %v183 = vmul.f32 %v181, %v171
    %v184 = vmul.f32 %v172, %v172
    %v185 = vmul.f32 %v173, %v173
    %v186 = vsub.f32 %v182, %v184
    %v187 = vsub.f32 %v183, %v185
    %v188 = vsub.f32 %v152, %v172
    %v189 = vsub.f32 %v157, %v173
    %v190 = vadd.f32 %v186, 1e-05
    %v191 = vadd.f32 %v187, 1e-05
    %v192 = vrsqrt.pop %v190
    %v193 = vrsqrt.pop %v191
    %v194 = vmul.f32 %v188, %v192
    %v195 = vmul.f32 %v189, %v193
    %v196 = vmul.f32 %v194, %v160
    %v197 = vmul.f32 %v195, %v161
    %v198 = vadd.f32 %v196, %v162
    %v199 = vadd.f32 %v197, %v163
    %v200 = vmax.f32 %v198, 0.0
    %v201 = vmax.f32 %v199, 0.0
    %v202 = vld [vmem:[#allocation7 + $0x10] sm:$0xff]
    %v203 = vld [vmem:[#allocation7 + $0x18] sm:$0xff]
    %v204 = vld [vmem:[#allocation7 + $0x20] sm:$0xff]
    %v205 = vld [vmem:[#allocation7 + $0x28] sm:$0xff]
    %v206 = vld [vmem:[#allocation8 + $0x30] sm:$0xff]
    %v207 = vld [vmem:[#allocation8 + $0x38] sm:$0xff]
    %v209 = vsel %vm164, %v200, 0
    %v212 = vsel %vm164, %v201, 0
    %214 = vmatprep.subr.mxu0 0.0
    %215 = vmatpush1.msra.mxu0 0.0
    %216 = vmatprep.subr.mxu0 0.0
    %217 = vmatpush1.msra.mxu0 0.0
    %218 = vmatprep.subr.mxu0 0.0
    %219 = vmatpush1.msra.mxu0 0.0
    %220 = vmatprep.subr.mxu0 0.0
    %221 = vmatpush1.msra.mxu0 0.0
    %222 = vmatprep.subr.mxu0 0.0
    %223 = vmatpush1.msra.mxu0 0.0
    %224 = vmatprep.subr.mxu0 0.0
    %225 = vmatpush1.msra.mxu0 0.0
    %226 = vmatprep.subr.mxu0 0.0
    %227 = vmatpush1.msra.mxu0 0.0
    %228 = vmatprep.subr.mxu0 0.0
    %229 = vmatpush1.msra.mxu0 0.0
    %230 = vmatprep.subr.mxu0 0.0
    %231 = vmatpush1.msra.mxu0 0.0
    %232 = vmatprep.subr.mxu0 0.0
    %233 = vmatpush1.msra.mxu0 0.0
    %234 = vmatprep.subr.mxu0 0.0
    %235 = vmatpush1.msra.mxu0 0.0
    %236 = vmatprep.subr.mxu0 0.0
    %237 = vmatpush1.msra.mxu0 0.0
    %238 = vmatprep.subr.mxu0 0.0
    %239 = vmatpush1.msra.mxu0 %v205
    %240 = vmatprep.subr.mxu0 0.0
    %241 = vmatpush1.msra.mxu0 %v204
    %242 = vmatprep.subr.mxu0 0.0
    %243 = vmatpush1.msra.mxu0 %v203
    %244 = vmatprep.subr.mxu0 0.0
    %245 = vmatpush1.msra.mxu0 %v202
    %246 = vmatprep.subr.mxu0 0.0
    %247 = vmatpush2.msra.mxu0 0.0
    %248 = vmatprep.subr.mxu0 0.0
    %249 = vmatpush2.msra.mxu0 0.0
    %250 = vmatprep.subr.mxu0 0.0
    %251 = vmatpush2.msra.mxu0 0.0
    %252 = vmatprep.subr.mxu0 0.0
    %253 = vmatpush2.msra.mxu0 0.0
    %254 = vmatprep.subr.mxu0 0.0
    %255 = vmatpush2.msra.mxu0 0.0
    %256 = vmatprep.subr.mxu0 0.0
    %257 = vmatpush2.msra.mxu0 0.0
    %258 = vmatprep.subr.mxu0 0.0
    %259 = vmatpush2.msra.mxu0 0.0
    %260 = vmatprep.subr.mxu0 0.0
    %261 = vmatpush2.msra.mxu0 0.0
    %262 = vmatprep.subr.mxu0 0.0
    %263 = vmatpush2.msra.mxu0 0.0
    %264 = vmatprep.subr.mxu0 0.0
    %265 = vmatpush2.msra.mxu0 0.0
    %266 = vmatprep.subr.mxu0 0.0
    %267 = vmatpush2.msra.mxu0 0.0
    %268 = vmatprep.subr.mxu0 0.0
    %269 = vmatpush2.msra.mxu0 0.0
    %270 = vmatprep.subr.mxu0 0.0
    %271 = vmatpush2.msra.mxu0 0.0
    %272 = vmatprep.subr.mxu0 0.0
    %273 = vmatpush2.msra.mxu0 0.0
    %274 = vmatprep.subr.mxu0 0.0
    %275 = vmatpush2.msra.mxu0 0.0
    %276 = vmatprep.subr.mxu0 0.0
    %277 = vmatpush2.msra.mxu0 0.0
    %278 = vmatprep.mubr.f32.mxu0 0.0
    %279 = vmatmul.mubr.f32.gmra.mxu0 %v209
    %v280 = vpop.f32.mrf.mxu0
    %v281 = vadd.f32 %v206, %v280
    %v282 = vpop.f32.mrf.mxu0
    %283 = vmatprep.mubr.f32.mxu0 0.0
    %284 = vmatmul.mubr.f32.gmra.mxu0 %v212
    %v285 = vpop.f32.mrf.mxu0
    %v286 = vadd.f32 %v207, %v285
    %v287 = vpop.f32.mrf.mxu0
    %288 = vdwg.mxu0
    %v289 = vld [vmem:[#allocation7 + $0x70] sm:$0xff]
    %v290 = vld [vmem:[#allocation7 + $0x78] sm:$0xff]
    %v291 = vld [vmem:[#allocation7 + $0x80] sm:$0xff]
    %v292 = vld [vmem:[#allocation7 + $0x88] sm:$0xff]
    %v293 = vld [vmem:[#allocation7 + $0x90] sm:$0xff]
    %v294 = vld [vmem:[#allocation7 + $0x98] sm:$0xff]
    %v295 = vld [vmem:[#allocation7 + $0xa0] sm:$0xff]
    %v296 = vld [vmem:[#allocation7 + $0xa8] sm:$0xff]
    %v297 = vld [vmem:[#allocation7 + $0xb0] sm:$0xff]
    %v298 = vld [vmem:[#allocation7 + $0xb8] sm:$0xff]
    %v299 = vld [vmem:[#allocation7 + $0xc0] sm:$0xff]
    %v300 = vld [vmem:[#allocation7 + $0xc8] sm:$0xff]
    %v301 = vld [vmem:[#allocation7 + $0xd0] sm:$0xff]
    %v302 = vld [vmem:[#allocation7 + $0xd8] sm:$0xff]
    %v303 = vld [vmem:[#allocation7 + $0xe0] sm:$0xff]
    %v304 = vld [vmem:[#allocation7 + $0xe8] sm:$0xff]
    %v305 = vld [vmem:[#allocation7 + $0xf0] sm:$0xff]
    %v306 = vld [vmem:[#allocation7 + $0x30] sm:$0xff]
    %v307 = vld [vmem:[#allocation7 + $0x38] sm:$0xff]
    %v308 = vld [vmem:[#allocation7 + $0x40] sm:$0xff]
    %v309 = vld [vmem:[#allocation7 + $0x48] sm:$0xff]
    %v310 = vld [vmem:[#allocation8 + $0x40] sm:$0x3]
    %v312 = vsel %vm164, %v71, 0
    %314 = vmatprep.subr.mxu0 0.0
    %315 = vmatpush1.msra.mxu0 0.0
    %316 = vmatprep.subr.mxu0 0.0
    %317 = vmatpush1.msra.mxu0 0.0
    %318 = vmatprep.subr.mxu0 0.0
    %319 = vmatpush1.msra.mxu0 0.0
    %320 = vmatprep.subr.mxu0 0.0
    %321 = vmatpush1.msra.mxu0 0.0
    %322 = vmatprep.subr.mxu0 0.0
    %323 = vmatpush1.msra.mxu0 0.0
    %324 = vmatprep.subr.mxu0 0.0
    %325 = vmatpush1.msra.mxu0 0.0
    %326 = vmatprep.subr.mxu0 0.0
    %327 = vmatpush1.msra.mxu0 0.0
    %328 = vmatprep.subr.mxu0 0.0
    %329 = vmatpush1.msra.mxu0 0.0
    %330 = vmatprep.subr.mxu0 0.0
    %331 = vmatpush1.msra.mxu0 0.0
    %332 = vmatprep.subr.mxu0 0.0
    %333 = vmatpush1.msra.mxu0 0.0
    %334 = vmatprep.subr.mxu0 0.0
    %335 = vmatpush1.msra.mxu0 0.0
    %336 = vmatprep.subr.mxu0 0.0
    %337 = vmatpush1.msra.mxu0 0.0
    %338 = vmatprep.subr.mxu0 0.0
    %339 = vmatpush1.msra.mxu0 %v309
    %340 = vmatprep.subr.mxu0 0.0
    %341 = vmatpush1.msra.mxu0 %v308
    %342 = vmatprep.subr.mxu0 0.0
    %343 = vmatpush1.msra.mxu0 %v307
    %344 = vmatprep.subr.mxu0 0.0
    %345 = vmatpush1.msra.mxu0 %v306
    %346 = vmatprep.subr.mxu0 0.0
    %347 = vmatpush2.msra.mxu0 0.0
    %348 = vmatprep.subr.mxu0 0.0
    %349 = vmatpush2.msra.mxu0 0.0
    %350 = vmatprep.subr.mxu0 0.0
    %351 = vmatpush2.msra.mxu0 0.0
    %352 = vmatprep.subr.mxu0 0.0
    %353 = vmatpush2.msra.mxu0 0.0
    %354 = vmatprep.subr.mxu0 0.0
    %355 = vmatpush2.msra.mxu0 0.0
    %356 = vmatprep.subr.mxu0 0.0
    %357 = vmatpush2.msra.mxu0 0.0
    %358 = vmatprep.subr.mxu0 0.0
    %359 = vmatpush2.msra.mxu0 0.0
    %360 = vmatprep.subr.mxu0 0.0
    %361 = vmatpush2.msra.mxu0 0.0
    %362 = vmatprep.subr.mxu0 0.0
    %363 = vmatpush2.msra.mxu0 0.0
    %364 = vmatprep.subr.mxu0 0.0
    %365 = vmatpush2.msra.mxu0 0.0
    %366 = vmatprep.subr.mxu0 0.0
    %367 = vmatpush2.msra.mxu0 0.0
    %368 = vmatprep.subr.mxu0 0.0
    %369 = vmatpush2.msra.mxu0 0.0
    %370 = vmatprep.subr.mxu0 0.0
    %371 = vmatpush2.msra.mxu0 0.0
    %372 = vmatprep.subr.mxu0 0.0
    %373 = vmatpush2.msra.mxu0 0.0
    %374 = vmatprep.subr.mxu0 0.0
    %375 = vmatpush2.msra.mxu0 0.0
    %376 = vmatprep.subr.mxu0 0.0
    %377 = vmatpush2.msra.mxu0 0.0
    %378 = vmatprep.mubr.f32.mxu0 0.0
    %379 = vmatmul.mubr.f32.gmra.mxu0 %v312
    %v380 = vpop.f32.mrf.mxu0
    %v381 = vadd.f32 %v310, %v380
    %v382 = vpop.f32.mrf.mxu0
    %383 = vdwg.mxu0
    %v386 = vunpack.c.l.s4 1966171168
    %v387 = vunpack.c.0.s8 %v386
    %v388 = vlaneseq
    %v389 = vshrl.u32 %v388, 7
    %v390 = vsub.s32 %v387, %v389
    %v391 = vrot.slane %v381, %v390
    %v392 = vcombine.high %v391, %v391
    %v394 = vunpack.c.l.s4 1966171168
    %v395 = vunpack.c.0.s8 %v394
    %v396 = vlaneseq
    %v397 = vshrl.u32 %v396, 7
    %v398 = vsub.s32 %v395, %v397
    %v399 = vrot.slane %v391, %v398
    %v401 = vunpack.c.l.s4 1966171168
    %v402 = vunpack.c.0.s8 %v401
    %v403 = vlaneseq
    %v404 = vshrl.u32 %v403, 7
    %v405 = vsub.s32 %v402, %v404
    %v406 = vrot.slane %v392, %v405
    %v407 = vlaneseq
    %v408 = vshrl.u32 %v407, 7
    %v409 = vsub.s32 0, %v408
    %v410 = vrot.slane %v399, %v409
    %v411 = vlaneseq
    %v412 = vshrl.u32 %v411, 7
    %v413 = vsub.s32 0, %v412
    %v414 = vrot.slane %v406, %v413
    %v417 = vmul.f32 %v410, %v281
    %v418 = vmul.f32 %v414, %v286
    %419 = vmatprep.subr.mxu0 0.0
    %420 = vmatpush1.msra.mxu0 %v304
    %421 = vmatprep.subr.mxu0 0.0
    %422 = vmatpush1.msra.mxu0 %v303
    %423 = vmatprep.subr.mxu0 0.0
    %424 = vmatpush1.msra.mxu0 %v302
    %425 = vmatprep.subr.mxu0 0.0
    %426 = vmatpush1.msra.mxu0 %v301
    %427 = vmatprep.subr.mxu0 0.0
    %428 = vmatpush1.msra.mxu0 %v300
    %429 = vmatprep.subr.mxu0 0.0
    %430 = vmatpush1.msra.mxu0 %v299
    %431 = vmatprep.subr.mxu0 0.0
    %432 = vmatpush1.msra.mxu0 %v298
    %433 = vmatprep.subr.mxu0 0.0
    %434 = vmatpush1.msra.mxu0 %v297
    %435 = vmatprep.subr.mxu0 0.0
    %436 = vmatpush1.msra.mxu0 %v296
    %437 = vmatprep.subr.mxu0 0.0
    %438 = vmatpush1.msra.mxu0 %v295
    %439 = vmatprep.subr.mxu0 0.0
    %440 = vmatpush1.msra.mxu0 %v294
    %441 = vmatprep.subr.mxu0 0.0
    %442 = vmatpush1.msra.mxu0 %v293
    %443 = vmatprep.subr.mxu0 0.0
    %444 = vmatpush1.msra.mxu0 %v292
    %445 = vmatprep.subr.mxu0 0.0
    %446 = vmatpush1.msra.mxu0 %v291
    %447 = vmatprep.subr.mxu0 0.0
    %448 = vmatpush1.msra.mxu0 %v290
    %449 = vmatprep.subr.mxu0 0.0
    %450 = vmatpush1.msra.mxu0 %v289
    %451 = vmatprep.subr.mxu0 0.0
    %452 = vmatpush2.msra.mxu0 0.0
    %453 = vmatprep.subr.mxu0 0.0
    %454 = vmatpush2.msra.mxu0 0.0
    %455 = vmatprep.subr.mxu0 0.0
    %456 = vmatpush2.msra.mxu0 0.0
    %457 = vmatprep.subr.mxu0 0.0
    %458 = vmatpush2.msra.mxu0 0.0
    %459 = vmatprep.subr.mxu0 0.0
    %460 = vmatpush2.msra.mxu0 0.0
    %461 = vmatprep.subr.mxu0 0.0
    %462 = vmatpush2.msra.mxu0 0.0
    %463 = vmatprep.subr.mxu0 0.0
    %464 = vmatpush2.msra.mxu0 0.0
    %465 = vmatprep.subr.mxu0 0.0
    %466 = vmatpush2.msra.mxu0 0.0
    %467 = vmatprep.subr.mxu0 0.0
    %468 = vmatpush2.msra.mxu0 0.0
    %469 = vmatprep.subr.mxu0 0.0
    %470 = vmatpush2.msra.mxu0 0.0
    %471 = vmatprep.subr.mxu0 0.0
    %472 = vmatpush2.msra.mxu0 0.0
    %473 = vmatprep.subr.mxu0 0.0
    %474 = vmatpush2.msra.mxu0 0.0
    %475 = vmatprep.subr.mxu0 0.0
    %476 = vmatpush2.msra.mxu0 0.0
    %477 = vmatprep.subr.mxu0 0.0
    %478 = vmatpush2.msra.mxu0 0.0
    %479 = vmatprep.subr.mxu0 0.0
    %480 = vmatpush2.msra.mxu0 0.0
    %481 = vmatprep.subr.mxu0 0.0
    %482 = vmatpush2.msra.mxu0 0.0
    %483 = vmatprep.mubr.f32.mxu0 0.0
    %484 = vmatmul.mubr.f32.gmra.mxu0 %v417
    %v485 = vpop.f32.mrf.mxu0
    %v486 = vadd.f32 0.0, %v485
    %v487 = vpop.f32.mrf.mxu0
    %488 = vmatprep.mubr.f32.mxu0 0.0
    %489 = vmatmul.mubr.f32.gmra.mxu0 %v418
    %v490 = vpop.f32.mrf.mxu0
    %v491 = vadd.f32 0.0, %v490
    %v492 = vpop.f32.mrf.mxu0
    %493 = vdwg.mxu0
    %vm494 = vcmask 64512
    %v495 = vsel %vm494, %v486, -inf
    %v496 = vrot.slane %v495, 4
    %v497 = vmax.f32 %v495, %v496
    %v498 = vrot.slane %v497, 2
    %v499 = vmax.f32 %v497, %v498
    %v500 = vrot.slane %v499, 1
    %v501 = vmax.f32 %v499, %v500
    %v502 = vsel %vm494, %v491, -inf
    %v503 = vrot.slane %v502, 4
    %v504 = vmax.f32 %v502, %v503
    %v505 = vrot.slane %v504, 2
    %v506 = vmax.f32 %v504, %v505
    %v507 = vrot.slane %v506, 1
    %v508 = vmax.f32 %v506, %v507
    %v509 = vsub.f32 %v486, %v501
    %v510 = vsub.f32 %v491, %v508
    %v511 = vmul.f32 %v509, 1.442695
    %v512 = vpow.pop %v511
    %v513 = vmul.f32 %v510, 1.442695
    %v514 = vpow.pop %v513
    %v515 = vsel %vm494, %v512, 0.0
    %v516 = vrot.slane %v515, 4
    %v517 = vadd.f32 %v515, %v516
    %v518 = vrot.slane %v517, 2
    %v519 = vadd.f32 %v517, %v518
    %v520 = vrot.slane %v519, 1
    %v521 = vadd.f32 %v519, %v520
    %v522 = vsel %vm494, %v514, 0.0
    %v523 = vrot.slane %v522, 4
    %v524 = vadd.f32 %v522, %v523
    %v525 = vrot.slane %v524, 2
    %v526 = vadd.f32 %v524, %v525
    %v527 = vrot.slane %v526, 1
    %v528 = vadd.f32 %v526, %v527
    %v529 = vrcp.pop %v521
    %v530 = vrcp.pop %v528
    %v531 = vmul.f32 %v512, %v529
    %v532 = vmul.f32 %v514, %v530
    %v534 = vsel %vm494, %v531, 0
    %v537 = vsel %vm494, %v532, 0
    %539 = vmatprep.subr.mxu0 0.0
    %540 = vmatpush1.msra.mxu0 0.0
    %541 = vmatprep.subr.mxu0 0.0
    %542 = vmatpush1.msra.mxu0 0.0
    %543 = vmatprep.subr.mxu0 0.0
    %544 = vmatpush1.msra.mxu0 0.0
    %545 = vmatprep.subr.mxu0 0.0
    %546 = vmatpush1.msra.mxu0 0.0
    %547 = vmatprep.subr.mxu0 0.0
    %548 = vmatpush1.msra.mxu0 0.0
    %549 = vmatprep.subr.mxu0 0.0
    %550 = vmatpush1.msra.mxu0 0.0
    %551 = vmatprep.subr.mxu0 0.0
    %552 = vmatpush1.msra.mxu0 0.0
    %553 = vmatprep.subr.mxu0 0.0
    %554 = vmatpush1.msra.mxu0 0.0
    %555 = vmatprep.subr.mxu0 0.0
    %556 = vmatpush1.msra.mxu0 0.0
    %557 = vmatprep.subr.mxu0 0.0
    %558 = vmatpush1.msra.mxu0 0.0
    %559 = vmatprep.subr.mxu0 0.0
    %560 = vmatpush1.msra.mxu0 0.0
    %561 = vmatprep.subr.mxu0 0.0
    %562 = vmatpush1.msra.mxu0 0.0
    %563 = vmatprep.subr.mxu0 0.0
    %564 = vmatpush1.msra.mxu0 0.0
    %565 = vmatprep.subr.mxu0 0.0
    %566 = vmatpush1.msra.mxu0 0.0
    %567 = vmatprep.subr.mxu0 0.0
    %568 = vmatpush1.msra.mxu0 0.0
    %569 = vmatprep.subr.mxu0 0.0
    %570 = vmatpush1.msra.mxu0 %v305
    %571 = vmatprep.subr.mxu0 0.0
    %572 = vmatpush2.msra.mxu0 0.0
    %573 = vmatprep.subr.mxu0 0.0
    %574 = vmatpush2.msra.mxu0 0.0
    %575 = vmatprep.subr.mxu0 0.0
    %576 = vmatpush2.msra.mxu0 0.0
    %577 = vmatprep.subr.mxu0 0.0
    %578 = vmatpush2.msra.mxu0 0.0
    %579 = vmatprep.subr.mxu0 0.0
    %580 = vmatpush2.msra.mxu0 0.0
    %581 = vmatprep.subr.mxu0 0.0
    %582 = vmatpush2.msra.mxu0 0.0
    %583 = vmatprep.subr.mxu0 0.0
    %584 = vmatpush2.msra.mxu0 0.0
    %585 = vmatprep.subr.mxu0 0.0
    %586 = vmatpush2.msra.mxu0 0.0
    %587 = vmatprep.subr.mxu0 0.0
    %588 = vmatpush2.msra.mxu0 0.0
    %589 = vmatprep.subr.mxu0 0.0
    %590 = vmatpush2.msra.mxu0 0.0
    %591 = vmatprep.subr.mxu0 0.0
    %592 = vmatpush2.msra.mxu0 0.0
    %593 = vmatprep.subr.mxu0 0.0
    %594 = vmatpush2.msra.mxu0 0.0
    %595 = vmatprep.subr.mxu0 0.0
    %596 = vmatpush2.msra.mxu0 0.0
    %597 = vmatprep.subr.mxu0 0.0
    %598 = vmatpush2.msra.mxu0 0.0
    %599 = vmatprep.subr.mxu0 0.0
    %600 = vmatpush2.msra.mxu0 0.0
    %601 = vmatprep.subr.mxu0 0.0
    %602 = vmatpush2.msra.mxu0 0.0
    %603 = vmatprep.mubr.f32.mxu0 0.0
    %604 = vmatmul.mubr.f32.gmra.mxu0 %v534
    %v605 = vpop.f32.mrf.mxu0
    %v606 = vadd.f32 0.0, %v605
    %v607 = vpop.f32.mrf.mxu0
    %608 = vmatprep.mubr.f32.mxu0 0.0
    %609 = vmatmul.mubr.f32.gmra.mxu0 %v537
    %v610 = vpop.f32.mrf.mxu0
    %v611 = vadd.f32 0.0, %v610
    %v612 = vpop.f32.mrf.mxu0
    %613 = vdwg.mxu0
    %v614 = vmul.f32 %v606, %v281
    %v615 = vmul.f32 %v611, %v286
    %v616 = vrot.slane %v614, 4
    %v617 = vadd.f32 %v614, %v616
    %v618 = vrot.slane %v617, 2
    %v619 = vadd.f32 %v617, %v618
    %v620 = vrot.slane %v619, 1
    %v621 = vadd.f32 %v619, %v620
    %v622 = vrot.slane %v615, 4
    %v623 = vadd.f32 %v615, %v622
    %v624 = vrot.slane %v623, 2
    %v625 = vadd.f32 %v623, %v624
    %v626 = vrot.slane %v625, 1
    %v627 = vadd.f32 %v625, %v626
    %v628 = vld [vmem:[#allocation7 + $0xf8] sm:$0xff]
    %v629 = vld [vmem:[#allocation7 + $0x100] sm:$0xff]
    %v630 = vld [vmem:[#allocation7 + $0x108] sm:$0xff]
    %v631 = vld [vmem:[#allocation7 + $0x110] sm:$0xff]
    %v632 = vld [vmem:[#allocation7 + $0x118] sm:$0xff]
    %v633 = vld [vmem:[#allocation7 + $0x120] sm:$0xff]
    %v634 = vld [vmem:[#allocation7 + $0x128] sm:$0xff]
    %v635 = vld [vmem:[#allocation7 + $0x130] sm:$0xff]
    %v636 = vld [vmem:[#allocation7 + $0x138] sm:$0xff]
    %v637 = vld [vmem:[#allocation7 + $0x140] sm:$0xff]
    %v638 = vld [vmem:[#allocation7 + $0x148] sm:$0xff]
    %v639 = vld [vmem:[#allocation7 + $0x150] sm:$0xff]
    %v640 = vld [vmem:[#allocation7 + $0x158] sm:$0xff]
    %v641 = vld [vmem:[#allocation7 + $0x160] sm:$0xff]
    %v642 = vld [vmem:[#allocation7 + $0x168] sm:$0xff]
    %v643 = vld [vmem:[#allocation7 + $0x170] sm:$0xff]
    %v644 = vld [vmem:[#allocation8 + $0x60] sm:$0x3]
    %vm647 = vcmask 1041409
    %v648 = vsel %vm647, %v627, %v621
    %650 = vmatprep.subr.mxu0 0.0
    %651 = vmatpush1.msra.mxu0 %v643
    %652 = vmatprep.subr.mxu0 0.0
    %653 = vmatpush1.msra.mxu0 %v642
    %654 = vmatprep.subr.mxu0 0.0
    %655 = vmatpush1.msra.mxu0 %v641
    %656 = vmatprep.subr.mxu0 0.0
    %657 = vmatpush1.msra.mxu0 %v640
    %658 = vmatprep.subr.mxu0 0.0
    %659 = vmatpush1.msra.mxu0 %v639
    %660 = vmatprep.subr.mxu0 0.0
    %661 = vmatpush1.msra.mxu0 %v638
    %662 = vmatprep.subr.mxu0 0.0
    %663 = vmatpush1.msra.mxu0 %v637
    %664 = vmatprep.subr.mxu0 0.0
    %665 = vmatpush1.msra.mxu0 %v636
    %666 = vmatprep.subr.mxu0 0.0
    %667 = vmatpush1.msra.mxu0 %v635
    %668 = vmatprep.subr.mxu0 0.0
    %669 = vmatpush1.msra.mxu0 %v634
    %670 = vmatprep.subr.mxu0 0.0
    %671 = vmatpush1.msra.mxu0 %v633
    %672 = vmatprep.subr.mxu0 0.0
    %673 = vmatpush1.msra.mxu0 %v632
    %674 = vmatprep.subr.mxu0 0.0
    %675 = vmatpush1.msra.mxu0 %v631
    %676 = vmatprep.subr.mxu0 0.0
    %677 = vmatpush1.msra.mxu0 %v630
    %678 = vmatprep.subr.mxu0 0.0
    %679 = vmatpush1.msra.mxu0 %v629
    %680 = vmatprep.subr.mxu0 0.0
    %681 = vmatpush1.msra.mxu0 %v628
    %682 = vmatprep.subr.mxu0 0.0
    %683 = vmatpush2.msra.mxu0 0.0
    %684 = vmatprep.subr.mxu0 0.0
    %685 = vmatpush2.msra.mxu0 0.0
    %686 = vmatprep.subr.mxu0 0.0
    %687 = vmatpush2.msra.mxu0 0.0
    %688 = vmatprep.subr.mxu0 0.0
    %689 = vmatpush2.msra.mxu0 0.0
    %690 = vmatprep.subr.mxu0 0.0
    %691 = vmatpush2.msra.mxu0 0.0
    %692 = vmatprep.subr.mxu0 0.0
    %693 = vmatpush2.msra.mxu0 0.0
    %694 = vmatprep.subr.mxu0 0.0
    %695 = vmatpush2.msra.mxu0 0.0
    %696 = vmatprep.subr.mxu0 0.0
    %697 = vmatpush2.msra.mxu0 0.0
    %698 = vmatprep.subr.mxu0 0.0
    %699 = vmatpush2.msra.mxu0 0.0
    %700 = vmatprep.subr.mxu0 0.0
    %701 = vmatpush2.msra.mxu0 0.0
    %702 = vmatprep.subr.mxu0 0.0
    %703 = vmatpush2.msra.mxu0 0.0
    %704 = vmatprep.subr.mxu0 0.0
    %705 = vmatpush2.msra.mxu0 0.0
    %706 = vmatprep.subr.mxu0 0.0
    %707 = vmatpush2.msra.mxu0 0.0
    %708 = vmatprep.subr.mxu0 0.0
    %709 = vmatpush2.msra.mxu0 0.0
    %710 = vmatprep.subr.mxu0 0.0
    %711 = vmatpush2.msra.mxu0 0.0
    %712 = vmatprep.subr.mxu0 0.0
    %713 = vmatpush2.msra.mxu0 0.0
    %714 = vmatprep.mubr.f32.mxu0 0.0
    %715 = vmatmul.mubr.f32.gmra.mxu0 %v648
    %v716 = vpop.f32.mrf.mxu0
    %v717 = vadd.f32 %v644, %v716
    %v718 = vpop.f32.mrf.mxu0
    %719 = vdwg.mxu0
    %v720 = vsel %vm494, %v531, 0.0
    %721 = vadd.xlane.f32.xlu0 %v720
    %v722 = vpop.xlane.xlu0 %721
    %v723 = vsel %vm494, %v532, 0.0
    %724 = vadd.xlane.f32.xlu0 %v723
    %v725 = vpop.xlane.xlu0 %724
    %v726 = vmul.f32 %v722, 0.125
    %v727 = vmul.f32 %v725, 0.125
    %v728 = vmul.f32 %v726, 1.442695
    %v729 = vpow.pop %v728
    %v730 = vmul.f32 %v727, 1.442695
    %v731 = vpow.pop %v730
    %v734 = vlaneseq
    %v735 = vand.u32 %v734, 127
    %v736 = vlaneseq
    %v737 = vshrl.u32 %v736, 7
    %v738 = vsub.s32 %v735, %v737
    %v739 = vrot.slane %v729, %v738
    %v740 = vlaneseq
    %v741 = vshrl.u32 %v740, 7
    %v742 = vsub.s32 %v735, %v741
    %v743 = vrot.slane %v731, %v742
    %v744 = vsel %vm647, %v743, %v739
    %vm746 = vcmask 58368
    %v747 = vsel %vm746, %v744, 0.0
    %748 = vadd.xlane.f32.xlu0 %v747
    %v749 = vpop.xlane.xlu0 %748
    %v750 = vrcp.pop %v749
    %v752 = vlaneseq
    %v753 = vshrl.u32 %v752, 7
    %v754 = vsub.s32 0, %v753
    %v755 = vrot.slane %v750, %v754
    %v756 = vlaneseq
    %v757 = vshrl.u32 %v756, 7
    %v758 = vsub.s32 1, %v757
    %v759 = vrot.slane %v750, %v758
    %v762 = vmul.f32 %v729, %v755
    %v763 = vmul.f32 %v731, %v759
    %v764 = vadd.f32 %v762, 0.0
    %v765 = vadd.f32 %v763, 0.0
    %v766 = vadd.f32 %v71, %v717
    %v767 = vld [vmem:[#allocation8 + $0x80] sm:$0x3]
    %v768 = vld [vmem:[#allocation8 + $0xa0] sm:$0x3]
    %vm769 = vcmask 254976
    %v770 = vsel %vm769, %v766, 0.0
    %771 = vadd.xlane.f32.xlu0 %v770
    %v772 = vpop.xlane.xlu0 %771
    %v773 = vmul.f32 %v772, %v171
    %v774 = vmul.f32 %v766, %v766
    %v775 = vsel %vm769, %v774, 0.0
    %776 = vadd.xlane.f32.xlu0 %v775
    %v777 = vpop.xlane.xlu0 %776
    %v778 = vmul.f32 %v777, %v171
    %v779 = vmul.f32 %v773, %v773
    %v780 = vsub.f32 %v778, %v779
    %v781 = vsub.f32 %v766, %v773
    %v782 = vadd.f32 %v780, 1e-05
    %v783 = vrsqrt.pop %v782
    %v784 = vmul.f32 %v781, %v783
    %v785 = vmul.f32 %v784, %v767
    %v786 = vadd.f32 %v785, %v768
    %v787 = vld [vmem:[#allocation7 + $0x50] sm:$0xff]
    %v788 = vld [vmem:[#allocation7 + $0x58] sm:$0xff]
    %v789 = vld [vmem:[#allocation7 + $0x60] sm:$0xff]
    %v790 = vld [vmem:[#allocation7 + $0x68] sm:$0xff]
    %v791 = vld [vmem:[#allocation8 + $0x50] sm:$0x3]
    %v793 = vsel %vm164, %v786, 0
    %795 = vmatprep.subr.mxu0 0.0
    %796 = vmatpush1.msra.mxu0 0.0
    %797 = vmatprep.subr.mxu0 0.0
    %798 = vmatpush1.msra.mxu0 0.0
    %799 = vmatprep.subr.mxu0 0.0
    %800 = vmatpush1.msra.mxu0 0.0
    %801 = vmatprep.subr.mxu0 0.0
    %802 = vmatpush1.msra.mxu0 0.0
    %803 = vmatprep.subr.mxu0 0.0
    %804 = vmatpush1.msra.mxu0 0.0
    %805 = vmatprep.subr.mxu0 0.0
    %806 = vmatpush1.msra.mxu0 0.0
    %807 = vmatprep.subr.mxu0 0.0
    %808 = vmatpush1.msra.mxu0 0.0
    %809 = vmatprep.subr.mxu0 0.0
    %810 = vmatpush1.msra.mxu0 0.0
    %811 = vmatprep.subr.mxu0 0.0
    %812 = vmatpush1.msra.mxu0 0.0
    %813 = vmatprep.subr.mxu0 0.0
    %814 = vmatpush1.msra.mxu0 0.0
    %815 = vmatprep.subr.mxu0 0.0
    %816 = vmatpush1.msra.mxu0 0.0
    %817 = vmatprep.subr.mxu0 0.0
    %818 = vmatpush1.msra.mxu0 0.0
    %819 = vmatprep.subr.mxu0 0.0
    %820 = vmatpush1.msra.mxu0 %v790
    %821 = vmatprep.subr.mxu0 0.0
    %822 = vmatpush1.msra.mxu0 %v789
    %823 = vmatprep.subr.mxu0 0.0
    %824 = vmatpush1.msra.mxu0 %v788
    %825 = vmatprep.subr.mxu0 0.0
    %826 = vmatpush1.msra.mxu0 %v787
    %827 = vmatprep.subr.mxu0 0.0
    %828 = vmatpush2.msra.mxu0 0.0
    %829 = vmatprep.subr.mxu0 0.0
    %830 = vmatpush2.msra.mxu0 0.0
    %831 = vmatprep.subr.mxu0 0.0
    %832 = vmatpush2.msra.mxu0 0.0
    %833 = vmatprep.subr.mxu0 0.0
    %834 = vmatpush2.msra.mxu0 0.0
    %835 = vmatprep.subr.mxu0 0.0
    %836 = vmatpush2.msra.mxu0 0.0
    %837 = vmatprep.subr.mxu0 0.0
    %838 = vmatpush2.msra.mxu0 0.0
    %839 = vmatprep.subr.mxu0 0.0
    %840 = vmatpush2.msra.mxu0 0.0
    %841 = vmatprep.subr.mxu0 0.0
    %842 = vmatpush2.msra.mxu0 0.0
    %843 = vmatprep.subr.mxu0 0.0
    %844 = vmatpush2.msra.mxu0 0.0
    %845 = vmatprep.subr.mxu0 0.0
    %846 = vmatpush2.msra.mxu0 0.0
    %847 = vmatprep.subr.mxu0 0.0
    %848 = vmatpush2.msra.mxu0 0.0
    %849 = vmatprep.subr.mxu0 0.0
    %850 = vmatpush2.msra.mxu0 0.0
    %851 = vmatprep.subr.mxu0 0.0
    %852 = vmatpush2.msra.mxu0 0.0
    %853 = vmatprep.subr.mxu0 0.0
    %854 = vmatpush2.msra.mxu0 0.0
    %855 = vmatprep.subr.mxu0 0.0
    %856 = vmatpush2.msra.mxu0 0.0
    %857 = vmatprep.subr.mxu0 0.0
    %858 = vmatpush2.msra.mxu0 0.0
    %859 = vmatprep.mubr.f32.mxu0 0.0
    %860 = vmatmul.mubr.f32.gmra.mxu0 %v793
    %v861 = vpop.f32.mrf.mxu0
    %v862 = vadd.f32 %v791, %v861
    %v863 = vpop.f32.mrf.mxu0
    %864 = vdwg.mxu0
    %v867 = vunpack.c.l.s4 1966171168
    %v868 = vunpack.c.0.s8 %v867
    %v869 = vlaneseq
    %v870 = vshrl.u32 %v869, 7
    %v871 = vsub.s32 %v868, %v870
    %v872 = vrot.slane %v862, %v871
    %v873 = vcombine.high %v872, %v872
    %v875 = vunpack.c.l.s4 1966171168
    %v876 = vunpack.c.0.s8 %v875
    %v877 = vlaneseq
    %v878 = vshrl.u32 %v877, 7
    %v879 = vsub.s32 %v876, %v878
    %v880 = vrot.slane %v872, %v879
    %v882 = vunpack.c.l.s4 1966171168
    %v883 = vunpack.c.0.s8 %v882
    %v884 = vlaneseq
    %v885 = vshrl.u32 %v884, 7
    %v886 = vsub.s32 %v883, %v885
    %v887 = vrot.slane %v873, %v886
    %v888 = vlaneseq
    %v889 = vshrl.u32 %v888, 7
    %v890 = vsub.s32 0, %v889
    %v891 = vrot.slane %v880, %v890
    %v892 = vlaneseq
    %v893 = vshrl.u32 %v892, 7
    %v894 = vsub.s32 0, %v893
    %v895 = vrot.slane %v887, %v894
    %v898 = vmul.f32 %v891, %v281
    %v899 = vmul.f32 %v895, %v286
    %900 = vmatprep.subr.mxu0 0.0
    %901 = vmatpush1.msra.mxu0 %v304
    %902 = vmatprep.subr.mxu0 0.0
    %903 = vmatpush1.msra.mxu0 %v303
    %904 = vmatprep.subr.mxu0 0.0
    %905 = vmatpush1.msra.mxu0 %v302
    %906 = vmatprep.subr.mxu0 0.0
    %907 = vmatpush1.msra.mxu0 %v301
    %908 = vmatprep.subr.mxu0 0.0
    %909 = vmatpush1.msra.mxu0 %v300
    %910 = vmatprep.subr.mxu0 0.0
    %911 = vmatpush1.msra.mxu0 %v299
    %912 = vmatprep.subr.mxu0 0.0
    %913 = vmatpush1.msra.mxu0 %v298
    %914 = vmatprep.subr.mxu0 0.0
    %915 = vmatpush1.msra.mxu0 %v297
    %916 = vmatprep.subr.mxu0 0.0
    %917 = vmatpush1.msra.mxu0 %v296
    %918 = vmatprep.subr.mxu0 0.0
    %919 = vmatpush1.msra.mxu0 %v295
    %920 = vmatprep.subr.mxu0 0.0
    %921 = vmatpush1.msra.mxu0 %v294
    %922 = vmatprep.subr.mxu0 0.0
    %923 = vmatpush1.msra.mxu0 %v293
    %924 = vmatprep.subr.mxu0 0.0
    %925 = vmatpush1.msra.mxu0 %v292
    %926 = vmatprep.subr.mxu0 0.0
    %927 = vmatpush1.msra.mxu0 %v291
    %928 = vmatprep.subr.mxu0 0.0
    %929 = vmatpush1.msra.mxu0 %v290
    %930 = vmatprep.subr.mxu0 0.0
    %931 = vmatpush1.msra.mxu0 %v289
    %932 = vmatprep.subr.mxu0 0.0
    %933 = vmatpush2.msra.mxu0 0.0
    %934 = vmatprep.subr.mxu0 0.0
    %935 = vmatpush2.msra.mxu0 0.0
    %936 = vmatprep.subr.mxu0 0.0
    %937 = vmatpush2.msra.mxu0 0.0
    %938 = vmatprep.subr.mxu0 0.0
    %939 = vmatpush2.msra.mxu0 0.0
    %940 = vmatprep.subr.mxu0 0.0
    %941 = vmatpush2.msra.mxu0 0.0
    %942 = vmatprep.subr.mxu0 0.0
    %943 = vmatpush2.msra.mxu0 0.0
    %944 = vmatprep.subr.mxu0 0.0
    %945 = vmatpush2.msra.mxu0 0.0
    %946 = vmatprep.subr.mxu0 0.0
    %947 = vmatpush2.msra.mxu0 0.0
    %948 = vmatprep.subr.mxu0 0.0
    %949 = vmatpush2.msra.mxu0 0.0
    %950 = vmatprep.subr.mxu0 0.0
    %951 = vmatpush2.msra.mxu0 0.0
    %952 = vmatprep.subr.mxu0 0.0
    %953 = vmatpush2.msra.mxu0 0.0
    %954 = vmatprep.subr.mxu0 0.0
    %955 = vmatpush2.msra.mxu0 0.0
    %956 = vmatprep.subr.mxu0 0.0
    %957 = vmatpush2.msra.mxu0 0.0
    %958 = vmatprep.subr.mxu0 0.0
    %959 = vmatpush2.msra.mxu0 0.0
    %960 = vmatprep.subr.mxu0 0.0
    %961 = vmatpush2.msra.mxu0 0.0
    %962 = vmatprep.subr.mxu0 0.0
    %963 = vmatpush2.msra.mxu0 0.0
    %964 = vmatprep.mubr.f32.mxu0 0.0
    %965 = vmatmul.mubr.f32.gmra.mxu0 %v898
    %v966 = vpop.f32.mrf.mxu0
    %v967 = vadd.f32 0.0, %v966
    %v968 = vpop.f32.mrf.mxu0
    %969 = vmatprep.mubr.f32.mxu0 0.0
    %970 = vmatmul.mubr.f32.gmra.mxu0 %v899
    %v971 = vpop.f32.mrf.mxu0
    %v972 = vadd.f32 0.0, %v971
    %v973 = vpop.f32.mrf.mxu0
    %974 = vdwg.mxu0
    %v975 = vsel %vm494, %v967, -inf
    %v976 = vrot.slane %v975, 4
    %v977 = vmax.f32 %v975, %v976
    %v978 = vrot.slane %v977, 2
    %v979 = vmax.f32 %v977, %v978
    %v980 = vrot.slane %v979, 1
    %v981 = vmax.f32 %v979, %v980
    %v982 = vsel %vm494, %v972, -inf
    %v983 = vrot.slane %v982, 4
    %v984 = vmax.f32 %v982, %v983
    %v985 = vrot.slane %v984, 2
    %v986 = vmax.f32 %v984, %v985
    %v987 = vrot.slane %v986, 1
    %v988 = vmax.f32 %v986, %v987
    %v989 = vsub.f32 %v967, %v981
    %v990 = vsub.f32 %v972, %v988
    %v991 = vmul.f32 %v989, 1.442695
    %v992 = vpow.pop %v991
    %v993 = vmul.f32 %v990, 1.442695
    %v994 = vpow.pop %v993
    %v995 = vsel %vm494, %v992, 0.0
    %v996 = vrot.slane %v995, 4
    %v997 = vadd.f32 %v995, %v996
    %v998 = vrot.slane %v997, 2
    %v999 = vadd.f32 %v997, %v998
    %v1000 = vrot.slane %v999, 1
    %v1001 = vadd.f32 %v999, %v1000
    %v1002 = vsel %vm494, %v994, 0.0
    %v1003 = vrot.slane %v1002, 4
    %v1004 = vadd.f32 %v1002, %v1003
    %v1005 = vrot.slane %v1004, 2
    %v1006 = vadd.f32 %v1004, %v1005
    %v1007 = vrot.slane %v1006, 1
    %v1008 = vadd.f32 %v1006, %v1007
    %v1009 = vrcp.pop %v1001
    %v1010 = vrcp.pop %v1008
    %v1011 = vmul.f32 %v992, %v1009
    %v1012 = vmul.f32 %v994, %v1010
    %v1014 = vsel %vm494, %v1011, 0
    %v1017 = vsel %vm494, %v1012, 0
    %1019 = vmatprep.subr.mxu0 0.0
    %1020 = vmatpush1.msra.mxu0 0.0
    %1021 = vmatprep.subr.mxu0 0.0
    %1022 = vmatpush1.msra.mxu0 0.0
    %1023 = vmatprep.subr.mxu0 0.0
    %1024 = vmatpush1.msra.mxu0 0.0
    %1025 = vmatprep.subr.mxu0 0.0
    %1026 = vmatpush1.msra.mxu0 0.0
    %1027 = vmatprep.subr.mxu0 0.0
    %1028 = vmatpush1.msra.mxu0 0.0
    %1029 = vmatprep.subr.mxu0 0.0
    %1030 = vmatpush1.msra.mxu0 0.0
    %1031 = vmatprep.subr.mxu0 0.0
    %1032 = vmatpush1.msra.mxu0 0.0
    %1033 = vmatprep.subr.mxu0 0.0
    %1034 = vmatpush1.msra.mxu0 0.0
    %1035 = vmatprep.subr.mxu0 0.0
    %1036 = vmatpush1.msra.mxu0 0.0
    %1037 = vmatprep.subr.mxu0 0.0
    %1038 = vmatpush1.msra.mxu0 0.0
    %1039 = vmatprep.subr.mxu0 0.0
    %1040 = vmatpush1.msra.mxu0 0.0
    %1041 = vmatprep.subr.mxu0 0.0
    %1042 = vmatpush1.msra.mxu0 0.0
    %1043 = vmatprep.subr.mxu0 0.0
    %1044 = vmatpush1.msra.mxu0 0.0
    %1045 = vmatprep.subr.mxu0 0.0
    %1046 = vmatpush1.msra.mxu0 0.0
    %1047 = vmatprep.subr.mxu0 0.0
    %1048 = vmatpush1.msra.mxu0 0.0
    %1049 = vmatprep.subr.mxu0 0.0
    %1050 = vmatpush1.msra.mxu0 %v305
    %1051 = vmatprep.subr.mxu0 0.0
    %1052 = vmatpush2.msra.mxu0 0.0
    %1053 = vmatprep.subr.mxu0 0.0
    %1054 = vmatpush2.msra.mxu0 0.0
    %1055 = vmatprep.subr.mxu0 0.0
    %1056 = vmatpush2.msra.mxu0 0.0
    %1057 = vmatprep.subr.mxu0 0.0
    %1058 = vmatpush2.msra.mxu0 0.0
    %1059 = vmatprep.subr.mxu0 0.0
    %1060 = vmatpush2.msra.mxu0 0.0
    %1061 = vmatprep.subr.mxu0 0.0
    %1062 = vmatpush2.msra.mxu0 0.0
    %1063 = vmatprep.subr.mxu0 0.0
    %1064 = vmatpush2.msra.mxu0 0.0
    %1065 = vmatprep.subr.mxu0 0.0
    %1066 = vmatpush2.msra.mxu0 0.0
    %1067 = vmatprep.subr.mxu0 0.0
    %1068 = vmatpush2.msra.mxu0 0.0
    %1069 = vmatprep.subr.mxu0 0.0
    %1070 = vmatpush2.msra.mxu0 0.0
    %1071 = vmatprep.subr.mxu0 0.0
    %1072 = vmatpush2.msra.mxu0 0.0
    %1073 = vmatprep.subr.mxu0 0.0
    %1074 = vmatpush2.msra.mxu0 0.0
    %1075 = vmatprep.subr.mxu0 0.0
    %1076 = vmatpush2.msra.mxu0 0.0
    %1077 = vmatprep.subr.mxu0 0.0
    %1078 = vmatpush2.msra.mxu0 0.0
    %1079 = vmatprep.subr.mxu0 0.0
    %1080 = vmatpush2.msra.mxu0 0.0
    %1081 = vmatprep.subr.mxu0 0.0
    %1082 = vmatpush2.msra.mxu0 0.0
    %1083 = vmatprep.mubr.f32.mxu0 0.0
    %1084 = vmatmul.mubr.f32.gmra.mxu0 %v1014
    %v1085 = vpop.f32.mrf.mxu0
    %v1086 = vadd.f32 0.0, %v1085
    %v1087 = vpop.f32.mrf.mxu0
    %1088 = vmatprep.mubr.f32.mxu0 0.0
    %1089 = vmatmul.mubr.f32.gmra.mxu0 %v1017
    %v1090 = vpop.f32.mrf.mxu0
    %v1091 = vadd.f32 0.0, %v1090
    %v1092 = vpop.f32.mrf.mxu0
    %1093 = vdwg.mxu0
    %v1094 = vmul.f32 %v1086, %v281
    %v1095 = vmul.f32 %v1091, %v286
    %v1096 = vrot.slane %v1094, 4
    %v1097 = vadd.f32 %v1094, %v1096
    %v1098 = vrot.slane %v1097, 2
    %v1099 = vadd.f32 %v1097, %v1098
    %v1100 = vrot.slane %v1099, 1
    %v1101 = vadd.f32 %v1099, %v1100
    %v1102 = vrot.slane %v1095, 4
    %v1103 = vadd.f32 %v1095, %v1102
    %v1104 = vrot.slane %v1103, 2
    %v1105 = vadd.f32 %v1103, %v1104
    %v1106 = vrot.slane %v1105, 1
    %v1107 = vadd.f32 %v1105, %v1106
    %v1108 = vld [vmem:[#allocation7 + $0x178] sm:$0xff]
    %v1109 = vld [vmem:[#allocation7 + $0x180] sm:$0xff]
    %v1110 = vld [vmem:[#allocation7 + $0x188] sm:$0xff]
    %v1111 = vld [vmem:[#allocation7 + $0x190] sm:$0xff]
    %v1112 = vld [vmem:[#allocation7 + $0x198] sm:$0xff]
    %v1113 = vld [vmem:[#allocation7 + $0x1a0] sm:$0xff]
    %v1114 = vld [vmem:[#allocation7 + $0x1a8] sm:$0xff]
    %v1115 = vld [vmem:[#allocation7 + $0x1b0] sm:$0xff]
    %v1116 = vld [vmem:[#allocation7 + $0x1b8] sm:$0xff]
    %v1117 = vld [vmem:[#allocation7 + $0x1c0] sm:$0xff]
    %v1118 = vld [vmem:[#allocation7 + $0x1c8] sm:$0xff]
    %v1119 = vld [vmem:[#allocation7 + $0x1d0] sm:$0xff]
    %v1120 = vld [vmem:[#allocation7 + $0x1d8] sm:$0xff]
    %v1121 = vld [vmem:[#allocation7 + $0x1e0] sm:$0xff]
    %v1122 = vld [vmem:[#allocation7 + $0x1e8] sm:$0xff]
    %v1123 = vld [vmem:[#allocation7 + $0x1f0] sm:$0xff]
    %v1124 = vld [vmem:[#allocation8 + $0x70] sm:$0x3]
    %v1127 = vsel %vm647, %v1107, %v1101
    %1129 = vmatprep.subr.mxu0 0.0
    %1130 = vmatpush1.msra.mxu0 %v1123
    %1131 = vmatprep.subr.mxu0 0.0
    %1132 = vmatpush1.msra.mxu0 %v1122
    %1133 = vmatprep.subr.mxu0 0.0
    %1134 = vmatpush1.msra.mxu0 %v1121
    %1135 = vmatprep.subr.mxu0 0.0
    %1136 = vmatpush1.msra.mxu0 %v1120
    %1137 = vmatprep.subr.mxu0 0.0
    %1138 = vmatpush1.msra.mxu0 %v1119
    %1139 = vmatprep.subr.mxu0 0.0
    %1140 = vmatpush1.msra.mxu0 %v1118
    %1141 = vmatprep.subr.mxu0 0.0
    %1142 = vmatpush1.msra.mxu0 %v1117
    %1143 = vmatprep.subr.mxu0 0.0
    %1144 = vmatpush1.msra.mxu0 %v1116
    %1145 = vmatprep.subr.mxu0 0.0
    %1146 = vmatpush1.msra.mxu0 %v1115
    %1147 = vmatprep.subr.mxu0 0.0
    %1148 = vmatpush1.msra.mxu0 %v1114
    %1149 = vmatprep.subr.mxu0 0.0
    %1150 = vmatpush1.msra.mxu0 %v1113
    %1151 = vmatprep.subr.mxu0 0.0
    %1152 = vmatpush1.msra.mxu0 %v1112
    %1153 = vmatprep.subr.mxu0 0.0
    %1154 = vmatpush1.msra.mxu0 %v1111
    %1155 = vmatprep.subr.mxu0 0.0
    %1156 = vmatpush1.msra.mxu0 %v1110
    %1157 = vmatprep.subr.mxu0 0.0
    %1158 = vmatpush1.msra.mxu0 %v1109
    %1159 = vmatprep.subr.mxu0 0.0
    %1160 = vmatpush1.msra.mxu0 %v1108
    %1161 = vmatprep.subr.mxu0 0.0
    %1162 = vmatpush2.msra.mxu0 0.0
    %1163 = vmatprep.subr.mxu0 0.0
    %1164 = vmatpush2.msra.mxu0 0.0
    %1165 = vmatprep.subr.mxu0 0.0
    %1166 = vmatpush2.msra.mxu0 0.0
    %1167 = vmatprep.subr.mxu0 0.0
    %1168 = vmatpush2.msra.mxu0 0.0
    %1169 = vmatprep.subr.mxu0 0.0
    %1170 = vmatpush2.msra.mxu0 0.0
    %1171 = vmatprep.subr.mxu0 0.0
    %1172 = vmatpush2.msra.mxu0 0.0
    %1173 = vmatprep.subr.mxu0 0.0
    %1174 = vmatpush2.msra.mxu0 0.0
    %1175 = vmatprep.subr.mxu0 0.0
    %1176 = vmatpush2.msra.mxu0 0.0
    %1177 = vmatprep.subr.mxu0 0.0
    %1178 = vmatpush2.msra.mxu0 0.0
    %1179 = vmatprep.subr.mxu0 0.0
    %1180 = vmatpush2.msra.mxu0 0.0
    %1181 = vmatprep.subr.mxu0 0.0
    %1182 = vmatpush2.msra.mxu0 0.0
    %1183 = vmatprep.subr.mxu0 0.0
    %1184 = vmatpush2.msra.mxu0 0.0
    %1185 = vmatprep.subr.mxu0 0.0
    %1186 = vmatpush2.msra.mxu0 0.0
    %1187 = vmatprep.subr.mxu0 0.0
    %1188 = vmatpush2.msra.mxu0 0.0
    %1189 = vmatprep.subr.mxu0 0.0
    %1190 = vmatpush2.msra.mxu0 0.0
    %1191 = vmatprep.subr.mxu0 0.0
    %1192 = vmatpush2.msra.mxu0 0.0
    %1193 = vmatprep.mubr.f32.mxu0 0.0
    %1194 = vmatmul.mubr.f32.gmra.mxu0 %v1127
    %v1195 = vpop.f32.mrf.mxu0
    %v1196 = vadd.f32 %v1124, %v1195
    %v1197 = vpop.f32.mrf.mxu0
    %1198 = vdwg.mxu0
    %v1199 = vsel %vm494, %v1011, 0.0
    %1200 = vadd.xlane.f32.xlu0 %v1199
    %v1201 = vpop.xlane.xlu0 %1200
    %v1202 = vsel %vm494, %v1012, 0.0
    %1203 = vadd.xlane.f32.xlu0 %v1202
    %v1204 = vpop.xlane.xlu0 %1203
    %v1205 = vmul.f32 %v1201, 0.125
    %v1206 = vmul.f32 %v1204, 0.125
    %v1207 = vmul.f32 %v1205, 1.442695
    %v1208 = vpow.pop %v1207
    %v1209 = vmul.f32 %v1206, 1.442695
    %v1210 = vpow.pop %v1209
    %v1213 = vlaneseq
    %v1214 = vshrl.u32 %v1213, 7
    %v1215 = vsub.s32 %v735, %v1214
    %v1216 = vrot.slane %v1208, %v1215
    %v1217 = vlaneseq
    %v1218 = vshrl.u32 %v1217, 7
    %v1219 = vsub.s32 %v735, %v1218
    %v1220 = vrot.slane %v1210, %v1219
    %v1221 = vsel %vm647, %v1220, %v1216
    %v1223 = vsel %vm746, %v1221, 0.0
    %1224 = vadd.xlane.f32.xlu0 %v1223
    %v1225 = vpop.xlane.xlu0 %1224
    %v1226 = vrcp.pop %v1225
    %v1228 = vlaneseq
    %v1229 = vshrl.u32 %v1228, 7
    %v1230 = vsub.s32 0, %v1229
    %v1231 = vrot.slane %v1226, %v1230
    %v1232 = vlaneseq
    %v1233 = vshrl.u32 %v1232, 7
    %v1234 = vsub.s32 1, %v1233
    %v1235 = vrot.slane %v1226, %v1234
    %v1238 = vmul.f32 %v1208, %v1231
    %v1239 = vmul.f32 %v1210, %v1235
    %v1240 = vadd.f32 %v764, %v1238
    %v1241 = vadd.f32 %v765, %v1239
    %v1242 = vadd.f32 %v786, %v1196
    %v1243 = vld [vmem:[#allocation8 + $0x90] sm:$0x3]
    %v1244 = vld [vmem:[#allocation8 + $0xb0] sm:$0x3]
    %v1245 = vsel %vm769, %v1242, 0.0
    %1246 = vadd.xlane.f32.xlu0 %v1245
    %v1247 = vpop.xlane.xlu0 %1246
    %v1248 = vmul.f32 %v1247, %v171
    %v1249 = vmul.f32 %v1242, %v1242
    %v1250 = vsel %vm769, %v1249, 0.0
    %1251 = vadd.xlane.f32.xlu0 %v1250
    %v1252 = vpop.xlane.xlu0 %1251
    %v1253 = vmul.f32 %v1252, %v171
    %v1254 = vmul.f32 %v1248, %v1248
    %v1255 = vsub.f32 %v1253, %v1254
    %v1256 = vsub.f32 %v1242, %v1248
    %v1257 = vadd.f32 %v1255, 1e-05
    %v1258 = vrsqrt.pop %v1257
    %v1259 = vmul.f32 %v1256, %v1258
    %v1260 = vmul.f32 %v1259, %v1243
    %v1261 = vadd.f32 %v1260, %v1244
    %v1262 = vld [vmem:[#allocation7 + $0x1f8] sm:$0xff]
    %v1263 = vld [vmem:[#allocation7 + $0x200] sm:$0xff]
    %v1264 = vld [vmem:[#allocation7 + $0x208] sm:$0xff]
    %v1265 = vld [vmem:[#allocation7 + $0x210] sm:$0xff]
    %v1266 = vld [vmem:[#allocation8 + $0xc0] sm:$0x3]
    %v1268 = vsel %vm164, %v1261, 0
    %1270 = vmatprep.subr.mxu0 0.0
    %1271 = vmatpush1.msra.mxu0 0.0
    %1272 = vmatprep.subr.mxu0 0.0
    %1273 = vmatpush1.msra.mxu0 0.0
    %1274 = vmatprep.subr.mxu0 0.0
    %1275 = vmatpush1.msra.mxu0 0.0
    %1276 = vmatprep.subr.mxu0 0.0
    %1277 = vmatpush1.msra.mxu0 0.0
    %1278 = vmatprep.subr.mxu0 0.0
    %1279 = vmatpush1.msra.mxu0 0.0
    %1280 = vmatprep.subr.mxu0 0.0
    %1281 = vmatpush1.msra.mxu0 0.0
    %1282 = vmatprep.subr.mxu0 0.0
    %1283 = vmatpush1.msra.mxu0 0.0
    %1284 = vmatprep.subr.mxu0 0.0
    %1285 = vmatpush1.msra.mxu0 0.0
    %1286 = vmatprep.subr.mxu0 0.0
    %1287 = vmatpush1.msra.mxu0 0.0
    %1288 = vmatprep.subr.mxu0 0.0
    %1289 = vmatpush1.msra.mxu0 0.0
    %1290 = vmatprep.subr.mxu0 0.0
    %1291 = vmatpush1.msra.mxu0 0.0
    %1292 = vmatprep.subr.mxu0 0.0
    %1293 = vmatpush1.msra.mxu0 0.0
    %1294 = vmatprep.subr.mxu0 0.0
    %1295 = vmatpush1.msra.mxu0 %v1265
    %1296 = vmatprep.subr.mxu0 0.0
    %1297 = vmatpush1.msra.mxu0 %v1264
    %1298 = vmatprep.subr.mxu0 0.0
    %1299 = vmatpush1.msra.mxu0 %v1263
    %1300 = vmatprep.subr.mxu0 0.0
    %1301 = vmatpush1.msra.mxu0 %v1262
    %1302 = vmatprep.subr.mxu0 0.0
    %1303 = vmatpush2.msra.mxu0 0.0
    %1304 = vmatprep.subr.mxu0 0.0
    %1305 = vmatpush2.msra.mxu0 0.0
    %1306 = vmatprep.subr.mxu0 0.0
    %1307 = vmatpush2.msra.mxu0 0.0
    %1308 = vmatprep.subr.mxu0 0.0
    %1309 = vmatpush2.msra.mxu0 0.0
    %1310 = vmatprep.subr.mxu0 0.0
    %1311 = vmatpush2.msra.mxu0 0.0
    %1312 = vmatprep.subr.mxu0 0.0
    %1313 = vmatpush2.msra.mxu0 0.0
    %1314 = vmatprep.subr.mxu0 0.0
    %1315 = vmatpush2.msra.mxu0 0.0
    %1316 = vmatprep.subr.mxu0 0.0
    %1317 = vmatpush2.msra.mxu0 0.0
    %1318 = vmatprep.subr.mxu0 0.0
    %1319 = vmatpush2.msra.mxu0 0.0
    %1320 = vmatprep.subr.mxu0 0.0
    %1321 = vmatpush2.msra.mxu0 0.0
    %1322 = vmatprep.subr.mxu0 0.0
    %1323 = vmatpush2.msra.mxu0 0.0
    %1324 = vmatprep.subr.mxu0 0.0
    %1325 = vmatpush2.msra.mxu0 0.0
    %1326 = vmatprep.subr.mxu0 0.0
    %1327 = vmatpush2.msra.mxu0 0.0
    %1328 = vmatprep.subr.mxu0 0.0
    %1329 = vmatpush2.msra.mxu0 0.0
    %1330 = vmatprep.subr.mxu0 0.0
    %1331 = vmatpush2.msra.mxu0 0.0
    %1332 = vmatprep.subr.mxu0 0.0
    %1333 = vmatpush2.msra.mxu0 0.0
    %1334 = vmatprep.mubr.f32.mxu0 0.0
    %1335 = vmatmul.mubr.f32.gmra.mxu0 %v1268
    %v1336 = vpop.f32.mrf.mxu0
    %v1337 = vadd.f32 %v1266, %v1336
    %v1338 = vpop.f32.mrf.mxu0
    %1339 = vdwg.mxu0
    %v1340 = vld [vmem:[#allocation8 + $0xd0] sm:$0x3]
    %v1341 = vld [vmem:[#allocation8 + $0xe0] sm:$0x3]
    %v1342 = vsel %vm769, %v1337, 0.0
    %1343 = vadd.xlane.f32.xlu0 %v1342
    %v1344 = vpop.xlane.xlu0 %1343
    %v1345 = vmul.f32 %v1344, %v171
    %v1346 = vmul.f32 %v1337, %v1337
    %v1347 = vsel %vm769, %v1346, 0.0
    %1348 = vadd.xlane.f32.xlu0 %v1347
    %v1349 = vpop.xlane.xlu0 %1348
    %v1350 = vmul.f32 %v1349, %v171
    %v1351 = vmul.f32 %v1345, %v1345
    %v1352 = vsub.f32 %v1350, %v1351
    %v1353 = vsub.f32 %v1337, %v1345
    %v1354 = vadd.f32 %v1352, 1e-05
    %v1355 = vrsqrt.pop %v1354
    %v1356 = vmul.f32 %v1353, %v1355
    %v1357 = vmul.f32 %v1356, %v1340
    %v1358 = vadd.f32 %v1357, %v1341
    %v1359 = vld [vmem:[#allocation7 + $0x218] sm:$0xff]
    %v1360 = vld [vmem:[#allocation7 + $0x220] sm:$0xff]
    %v1361 = vld [vmem:[#allocation7 + $0x228] sm:$0xff]
    %v1362 = vld [vmem:[#allocation7 + $0x230] sm:$0xff]
    %v1363 = vld [vmem:[#allocation8 + $0xf0] sm:$0x3]
    %v1365 = vsel %vm164, %v1358, 0
    %1367 = vmatprep.subr.mxu0 0.0
    %1368 = vmatpush1.msra.mxu0 0.0
    %1369 = vmatprep.subr.mxu0 0.0
    %1370 = vmatpush1.msra.mxu0 0.0
    %1371 = vmatprep.subr.mxu0 0.0
    %1372 = vmatpush1.msra.mxu0 0.0
    %1373 = vmatprep.subr.mxu0 0.0
    %1374 = vmatpush1.msra.mxu0 0.0
    %1375 = vmatprep.subr.mxu0 0.0
    %1376 = vmatpush1.msra.mxu0 0.0
    %1377 = vmatprep.subr.mxu0 0.0
    %1378 = vmatpush1.msra.mxu0 0.0
    %1379 = vmatprep.subr.mxu0 0.0
    %1380 = vmatpush1.msra.mxu0 0.0
    %1381 = vmatprep.subr.mxu0 0.0
    %1382 = vmatpush1.msra.mxu0 0.0
    %1383 = vmatprep.subr.mxu0 0.0
    %1384 = vmatpush1.msra.mxu0 0.0
    %1385 = vmatprep.subr.mxu0 0.0
    %1386 = vmatpush1.msra.mxu0 0.0
    %1387 = vmatprep.subr.mxu0 0.0
    %1388 = vmatpush1.msra.mxu0 0.0
    %1389 = vmatprep.subr.mxu0 0.0
    %1390 = vmatpush1.msra.mxu0 0.0
    %1391 = vmatprep.subr.mxu0 0.0
    %1392 = vmatpush1.msra.mxu0 %v1362
    %1393 = vmatprep.subr.mxu0 0.0
    %1394 = vmatpush1.msra.mxu0 %v1361
    %1395 = vmatprep.subr.mxu0 0.0
    %1396 = vmatpush1.msra.mxu0 %v1360
    %1397 = vmatprep.subr.mxu0 0.0
    %1398 = vmatpush1.msra.mxu0 %v1359
    %1399 = vmatprep.subr.mxu0 0.0
    %1400 = vmatpush2.msra.mxu0 0.0
    %1401 = vmatprep.subr.mxu0 0.0
    %1402 = vmatpush2.msra.mxu0 0.0
    %1403 = vmatprep.subr.mxu0 0.0
    %1404 = vmatpush2.msra.mxu0 0.0
    %1405 = vmatprep.subr.mxu0 0.0
    %1406 = vmatpush2.msra.mxu0 0.0
    %1407 = vmatprep.subr.mxu0 0.0
    %1408 = vmatpush2.msra.mxu0 0.0
    %1409 = vmatprep.subr.mxu0 0.0
    %1410 = vmatpush2.msra.mxu0 0.0
    %1411 = vmatprep.subr.mxu0 0.0
    %1412 = vmatpush2.msra.mxu0 0.0
    %1413 = vmatprep.subr.mxu0 0.0
    %1414 = vmatpush2.msra.mxu0 0.0
    %1415 = vmatprep.subr.mxu0 0.0
    %1416 = vmatpush2.msra.mxu0 0.0
    %1417 = vmatprep.subr.mxu0 0.0
    %1418 = vmatpush2.msra.mxu0 0.0
    %1419 = vmatprep.subr.mxu0 0.0
    %1420 = vmatpush2.msra.mxu0 0.0
    %1421 = vmatprep.subr.mxu0 0.0
    %1422 = vmatpush2.msra.mxu0 0.0
    %1423 = vmatprep.subr.mxu0 0.0
    %1424 = vmatpush2.msra.mxu0 0.0
    %1425 = vmatprep.subr.mxu0 0.0
    %1426 = vmatpush2.msra.mxu0 0.0
    %1427 = vmatprep.subr.mxu0 0.0
    %1428 = vmatpush2.msra.mxu0 0.0
    %1429 = vmatprep.subr.mxu0 0.0
    %1430 = vmatpush2.msra.mxu0 0.0
    %1431 = vmatprep.mubr.f32.mxu0 0.0
    %1432 = vmatmul.mubr.f32.gmra.mxu0 %v1365
    %v1433 = vpop.f32.mrf.mxu0
    %v1434 = vadd.f32 %v1363, %v1433
    %v1435 = vpop.f32.mrf.mxu0
    %1436 = vdwg.mxu0
    %v1437 = vmax.f32 %v1434, 0.0
    %v1438 = vld [vmem:[#allocation7 + $0x238] sm:$0xff]
    %v1439 = vld [vmem:[#allocation7 + $0x240] sm:$0xff]
    %v1440 = vld [vmem:[#allocation8 + $0x100] sm:$0x3]
    %v1442 = vsel %vm78, %v1437, 0
    %1444 = vmatprep.subr.mxu0 0.0
    %1445 = vmatpush1.msra.mxu0 0.0
    %1446 = vmatprep.subr.mxu0 0.0
    %1447 = vmatpush1.msra.mxu0 0.0
    %1448 = vmatprep.subr.mxu0 0.0
    %1449 = vmatpush1.msra.mxu0 0.0
    %1450 = vmatprep.subr.mxu0 0.0
    %1451 = vmatpush1.msra.mxu0 0.0
    %1452 = vmatprep.subr.mxu0 0.0
    %1453 = vmatpush1.msra.mxu0 0.0
    %1454 = vmatprep.subr.mxu0 0.0
    %1455 = vmatpush1.msra.mxu0 0.0
    %1456 = vmatprep.subr.mxu0 0.0
    %1457 = vmatpush1.msra.mxu0 0.0
    %1458 = vmatprep.subr.mxu0 0.0
    %1459 = vmatpush1.msra.mxu0 0.0
    %1460 = vmatprep.subr.mxu0 0.0
    %1461 = vmatpush1.msra.mxu0 0.0
    %1462 = vmatprep.subr.mxu0 0.0
    %1463 = vmatpush1.msra.mxu0 0.0
    %1464 = vmatprep.subr.mxu0 0.0
    %1465 = vmatpush1.msra.mxu0 0.0
    %1466 = vmatprep.subr.mxu0 0.0
    %1467 = vmatpush1.msra.mxu0 0.0
    %1468 = vmatprep.subr.mxu0 0.0
    %1469 = vmatpush1.msra.mxu0 0.0
    %1470 = vmatprep.subr.mxu0 0.0
    %1471 = vmatpush1.msra.mxu0 0.0
    %1472 = vmatprep.subr.mxu0 0.0
    %1473 = vmatpush1.msra.mxu0 %v1439
    %1474 = vmatprep.subr.mxu0 0.0
    %1475 = vmatpush1.msra.mxu0 %v1438
    %1476 = vmatprep.subr.mxu0 0.0
    %1477 = vmatpush2.msra.mxu0 0.0
    %1478 = vmatprep.subr.mxu0 0.0
    %1479 = vmatpush2.msra.mxu0 0.0
    %1480 = vmatprep.subr.mxu0 0.0
    %1481 = vmatpush2.msra.mxu0 0.0
    %1482 = vmatprep.subr.mxu0 0.0
    %1483 = vmatpush2.msra.mxu0 0.0
    %1484 = vmatprep.subr.mxu0 0.0
    %1485 = vmatpush2.msra.mxu0 0.0
    %1486 = vmatprep.subr.mxu0 0.0
    %1487 = vmatpush2.msra.mxu0 0.0
    %1488 = vmatprep.subr.mxu0 0.0
    %1489 = vmatpush2.msra.mxu0 0.0
    %1490 = vmatprep.subr.mxu0 0.0
    %1491 = vmatpush2.msra.mxu0 0.0
    %1492 = vmatprep.subr.mxu0 0.0
    %1493 = vmatpush2.msra.mxu0 0.0
    %1494 = vmatprep.subr.mxu0 0.0
    %1495 = vmatpush2.msra.mxu0 0.0
    %1496 = vmatprep.subr.mxu0 0.0
    %1497 = vmatpush2.msra.mxu0 0.0
    %1498 = vmatprep.subr.mxu0 0.0
    %1499 = vmatpush2.msra.mxu0 0.0
    %1500 = vmatprep.subr.mxu0 0.0
    %1501 = vmatpush2.msra.mxu0 0.0
    %1502 = vmatprep.subr.mxu0 0.0
    %1503 = vmatpush2.msra.mxu0 0.0
    %1504 = vmatprep.subr.mxu0 0.0
    %1505 = vmatpush2.msra.mxu0 0.0
    %1506 = vmatprep.subr.mxu0 0.0
    %1507 = vmatpush2.msra.mxu0 0.0
    %1508 = vmatprep.mubr.f32.mxu0 0.0
    %1509 = vmatmul.mubr.f32.gmra.mxu0 %v1442
    %v1510 = vpop.f32.mrf.mxu0
    %v1511 = vadd.f32 %v1440, %v1510
    %v1512 = vpop.f32.mrf.mxu0
    %1513 = vdwg.mxu0
    %v1514 = vsub.f32 0.0, %v1511
    %v1515 = vmul.f32 %v1514, 1.442695
    %v1516 = vpow.pop %v1515
    %v1517 = vadd.f32 %v1516, 1.0
    %v1518 = vrcp.pop %v1517
    %v1519 = vmul.f32 %v1240, 0.5
    %v1520 = vmul.f32 %v1241, 0.5
    %1523 = vset.pattern.permute.xlu0 0
    %1524 = vperm.xlu0 %1523, %v1519
    %v1525 = vpop.permute.xlu0 %1524
    %1526 = vset.pattern.permute.xlu0 0
    %1527 = vperm.xlu0 %1526, %v1520
    %v1528 = vpop.permute.xlu0 %1527
    %v1529 = vadd.s32 %v735, 4294967264
    %v1530 = vlaneseq
    %v1531 = vshrl.u32 %v1530, 7
    %v1532 = vsub.s32 %v1529, %v1531
    %v1533 = vrot.slane %v1525, %v1532
    %v1534 = vlaneseq
    %v1535 = vshrl.u32 %v1534, 7
    %v1536 = vsub.s32 %v1529, %v1535
    %v1537 = vrot.slane %v1528, %v1536
    %v1538 = vsel %vm647, %v1537, %v1533
    %1541 = vrot.lane.b32.xlu0 %v1518, 40
    %v1542 = vpop.permute.xlu0 %1541
    %v1544 = vsel %vm164, %v1358, %v1538
    %vm1545 = vcmask 326656
    %v1546 = vsel %vm1545, %v1544, %v1542
    %vm1547 = vcmask 334848
    %v1548 = vsel %vm1547, %v1546, 0.0
    %1549 = vst [vmem:[#allocation10] sm:$0x3] %v1548
    // Predicated region
    $region34: #{tpu_custom_call.1} parent=1 // pred_check
      _
    $region35: #{tpu_custom_call.1} parent=1 // pred_check_branch
      %1551 = sbr.rel (0) target = $region37
    $region36: #{tpu_custom_call.1} parent=1 // pred_region
      %s1553 = ssub.s32 32, 32
      %1554 = vsyncadd [#allocation4], %s1553
      %s1556 = sshll.u32 [#allocation10], 4
      %s1557 = int_to_ptr.vmem [resolvable:$true] %s1556
      %1559 = dma.vmem_to_hbm [thread:$0]  %s1557, 32, %s4, [#allocation4]
    $region37: #{tpu_custom_call.1} parent=1 // pred_fallthru
      _
    // Predicated region
    $region38: #{tpu_custom_call.1} parent=1 // pred_check
      _
    $region39: #{tpu_custom_call.1} parent=1 // pred_check_branch
      %1561 = sbr.rel (0) target = $region41
    $region40: #{tpu_custom_call.1} parent=1 // pred_region
      %1562 = dma.done [#allocation4], 32
    $region41: #{tpu_custom_call.1} parent=1 // pred_fallthru
      _
    %1563 = vsyncpa [#allocation3], 1
    %1564 = vsyncpa [#allocation6], 1
    %1565 = vsyncpa [#allocation9], 1
    %1566 = vsyncpa [#allocation4], 1

</llo_original>
